<compile_context>
chip_gen: v7x
topology: tpu7x:2x2x1
jax: 0.10.0
libtpu: 0.0.40
codegen_flags: <defaults>
</compile_context>

<pallas_src>
import functools

import numpy as np
import jax
import jax.numpy as jnp
from jax.experimental import pallas as pl
from jax.experimental.pallas import tpu as pltpu


# ----------------------------------------------------------------------------
# Pallas kernel: one batch-block (Bt, S, D) per grid step, everything in VMEM
# ----------------------------------------------------------------------------

def _encoder_kernel(S, D, DFF, x_ref, c_ref, o_ref):
    Bt = x_ref.shape[0]
    x = x_ref[...]                                  # (Bt, S, D)
    c = c_ref[...]                                  # (rows, 128) const slab

    # ---- static unpack of the const slab (offsets mirror _pack_consts) ----
    r = 0
    pos   = c[r:r + S, 0:D];         r += S         # (S, D)
    wqkv1 = c[r:r + D, 0:3 * D];     r += D         # layer-1 fused q|k|v
    wo1   = c[r:r + D, 0:D];         r += D
    wqkv2 = c[r:r + D, 0:3 * D];     r += D         # layer-2 fused q|k|v
    wo2   = c[r:r + D, 0:D];         r += D
    w1    = c[r:r + D, 0:DFF];       r += D         # lin1 W^T
    w2    = c[r:r + DFF, 0:D];       r += DFF       # lin2 W^T
    bqkv1 = c[r + 0:r + 1, 0:3 * D]
    bo1   = c[r + 1:r + 2, 0:D]
    bqkv2 = c[r + 2:r + 3, 0:3 * D]
    bo2   = c[r + 3:r + 4, 0:D]
    b1    = c[r + 4:r + 5, 0:DFF]
    b2    = c[r + 5:r + 6, 0:D]
    n1g, n1b = c[r + 6:r + 7, 0:D], c[r + 7:r + 8, 0:D]
    n2g, n2b = c[r + 8:r + 9, 0:D], c[r + 9:r + 10, 0:D]

    inv_sqrt_d = float(D) ** -0.5

    def proj(h, w, b):
        # Tiny-K linear as an unrolled VPU broadcast-FMA (the MXU would be
        # >96% padding at K<=8).  h: (Bt, S, K), w: (K, N), b: (1, N).
        acc = h[..., 0:1] * w[0:1, :]
        for k in range(1, w.shape[0]):
            acc = acc + h[..., k:k + 1] * w[k:k + 1, :]
        return acc + b

    def layernorm(h, g, b):
        # two-pass mean/variance, eps matches torch.nn.LayerNorm
        mu = jnp.mean(h, axis=-1, keepdims=True)
        d = h - mu
        var = jnp.mean(d * d, axis=-1, keepdims=True)
        return d * jax.lax.rsqrt(var + 1e-5) * g + b

    def attn(h, wqkv, bqkv, wo, bo):
        # MultiHeadFeatureSelfAttention with nhead=1 (d_k == d_model).  The
        # x[..., :num_features_to_use] slicing for q/k is folded into
        # zero-padded weight rows (exact).
        qkv = proj(h, wqkv, bqkv)                                   # (Bt,S,3D)
        q, k, v = qkv[..., 0:D], qkv[..., D:2 * D], qkv[..., 2 * D:3 * D]
        s = jnp.einsum('bqd,bkd->bqk', q, k,
                       preferred_element_type=jnp.float32) * inv_sqrt_d
        s = s - jnp.max(s, axis=-1, keepdims=True)
        p = jnp.exp(s)
        a = p * pl.reciprocal(jnp.sum(p, axis=-1, keepdims=True),
                              approx=True)                          # EUP slot
        o = jnp.einsum('bqk,bkd->bqd', a, v,
                       preferred_element_type=jnp.float32)
        return proj(o, wo, bo)

    def ffn(h):
        # linear2(relu(linear1(h))); all dropouts have p=0 -> identity
        hid = jnp.maximum(proj(h, w1, b1), 0.0)
        return proj(hid, w2, b2)

    # Lower-triangular ones generated in-kernel (no (S,S) HBM operand).
    # cumsum over seq == tri @ f, done as a batched einsum.
    # TODO(synk): for large S replace the O(S^2 D) tri-matmul with a blocked
    # running cumsum carried in VMEM scratch across seq tiles.
    row = jax.lax.broadcasted_iota(jnp.int32, (S, S), 0)
    col = jax.lax.broadcasted_iota(jnp.int32, (S, S), 1)
    tri = jnp.broadcast_to((row >= col).astype(jnp.float32), (Bt, S, S))

    src = x
    # block 1: feature self-attention on (src + pos), residual, norm1
    src = layernorm(src + attn(src + pos, wqkv1, bqkv1, wo1, bo1), n1g, n1b)
    # block 2: FFN -> cumsum over seq, residual, norm2
    cum = jnp.einsum('bqk,bkd->bqd', tri, ffn(src),
                     preferred_element_type=jnp.float32)
    src = layernorm(src + cum, n2g, n2b)
    # block 3: full-feature self-attention, residual, norm2
    src = layernorm(src + attn(src, wqkv2, bqkv2, wo2, bo2), n2g, n2b)
    # block 4: second FFN (no cumsum), residual, norm2
    src = layernorm(src + ffn(src), n2g, n2b)

    o_ref[...] = src


# ----------------------------------------------------------------------------
# Host-side packing of ALL constants into one lane-padded slab
# ----------------------------------------------------------------------------

def _pack_consts(S, D, DFF, params, num_features_to_use):
    del num_features_to_use  # implied by the q/k weight shapes (zero-padded)
    Wc = ((max(3 * D, DFF, D) + 127) // 128) * 128
    n_rows = S + 5 * D + DFF + 10
    R = ((n_rows + 7) // 8) * 8
    slab = np.zeros((R, Wc), np.float32)

    def wt(name):
        return np.asarray(params[name][0], np.float32).T      # (in, out)

    def bias(name):
        return np.asarray(params[name][1], np.float32).reshape(-1)

    def put_qkv(row0, qn, kn, vn):
        # q,k take only the first num_features_to_use inputs; rows beyond that
        # stay zero, which folds x[..., :nfeat] into the fused weight exactly.
        for j, name in enumerate((qn, kn, vn)):
            w_t = wt(name)
            slab[row0:row0 + w_t.shape[0], j * D:(j + 1) * D] = w_t

    r = 0
    slab[r:r + S, 0:D] = np.asarray(params['pos_table'], np.float32)[:S, :D]
    r += S
    put_qkv(r, 'l1_q', 'l1_k', 'l1_v');                r += D
    slab[r:r + D, 0:D] = wt('l1_o');                   r += D
    put_qkv(r, 'l2_q', 'l2_k', 'l2_v');                r += D
    slab[r:r + D, 0:D] = wt('l2_o');                   r += D
    slab[r:r + D, 0:DFF] = wt('lin1');                 r += D
    slab[r:r + DFF, 0:D] = wt('lin2');                 r += DFF
    slab[r + 0, 0:3 * D] = np.concatenate([bias('l1_q'), bias('l1_k'),
                                           bias('l1_v')])
    slab[r + 1, 0:D] = bias('l1_o')
    slab[r + 2, 0:3 * D] = np.concatenate([bias('l2_q'), bias('l2_k'),
                                           bias('l2_v')])
    slab[r + 3, 0:D] = bias('l2_o')
    slab[r + 4, 0:DFF] = bias('lin1')
    slab[r + 5, 0:D] = bias('lin2')
    slab[r + 6, 0:D] = np.asarray(params['norm1'][0], np.float32)
    slab[r + 7, 0:D] = np.asarray(params['norm1'][1], np.float32)
    slab[r + 8, 0:D] = np.asarray(params['norm2'][0], np.float32)
    slab[r + 9, 0:D] = np.asarray(params['norm2'][1], np.float32)
    return jnp.asarray(slab)


# ----------------------------------------------------------------------------
# Wrapper
# ----------------------------------------------------------------------------

def _pick_block_batch(B, S):
    """Batch-block size per grid step.

    Big enough to amortize the ~0.35us per-grid-step overhead (target ~1024
    token-rows per step), small enough that the in-kernel (Bt, S, S) softmax /
    cumsum temporaries stay a couple of MiB; for large B multiple steps remain
    so both v7x TensorCores get work on the "parallel" batch axis.
    """
    bt = max(1, min(B, pl.cdiv(1024, S)))
    bt = max(1, min(bt, (2 * 1024 * 1024) // max(1, 4 * S * S)))
    return bt


def _vmem_limit_bytes():
    # ~75% of physical VMEM: ~96 MiB on v5e/v6e (128 MiB), ~48 MiB on v7x
    # (64 MiB, shared with compiler scratch).  Safe fallback = 48 MiB.
    try:
        cap = pltpu.get_tpu_info().vmem_capacity_bytes
        return int(min(100 * 1024 * 1024, cap * 3 // 4))
    except Exception:
        return 48 * 1024 * 1024


def custom_encoder_forward(src, params, num_features_to_use=2):
    """src: (B, S, input_dim) float32 -> (B, S, d_model) float32 (batch-major)."""
    src = jnp.asarray(src, jnp.float32)
    B, S, D = src.shape
    DFF = int(params['lin1'][0].shape[0])

    consts = _pack_consts(S, D, DFF, params, num_features_to_use)

    bt = _pick_block_batch(B, S)
    n_steps = pl.cdiv(B, bt)
    Bp = n_steps * bt
    if Bp != B:                       # pad batch so the block divides evenly
        src = jnp.pad(src, ((0, Bp - B), (0, 0), (0, 0)))

    kernel = functools.partial(_encoder_kernel, S, D, DFF)

    flops = Bp * (16 * S * D * D + 10 * S * S * D + 8 * S * D * DFF)
    transcendentals = Bp * (2 * S * S + 6 * S)
    bytes_accessed = 4 * int(2 * Bp * S * D + consts.size)
    ce = pl.CostEstimate(flops=flops, transcendentals=transcendentals,
                         bytes_accessed=bytes_accessed)

    out = pl.pallas_call(
        kernel,
        out_shape=jax.ShapeDtypeStruct((Bp, S, D), jnp.float32),
        grid=(n_steps,),
        in_specs=[
            pl.BlockSpec((bt, S, D), lambda b: (b, 0, 0)),     # batch block
            pl.BlockSpec(tuple(consts.shape), lambda b: (0, 0)),  # const slab
        ],
        out_specs=pl.BlockSpec((bt, S, D), lambda b: (b, 0, 0)),
        compiler_params=pltpu.CompilerParams(
            dimension_semantics=("parallel",),      # megacore split on v7x
            vmem_limit_bytes=_vmem_limit_bytes()),
        cost_estimate=ce,
    )(src, consts)
    return out[:B] if Bp != B else out


# ----------------------------------------------------------------------------
# Independent pure-jnp reference (standard batched ops, unpacked params)
# ----------------------------------------------------------------------------

def reference_forward(src, params, num_features_to_use=2):
    x = jnp.asarray(src, jnp.float32)
    S = x.shape[1]
    pos = jnp.asarray(params['pos_table'][:S, :], jnp.float32)

    def linear(h, wb):
        w, b = wb                                   # torch (out, in)
        return h @ jnp.asarray(w, jnp.float32).T + jnp.asarray(b, jnp.float32)

    def mhfsa(h, qwb, kwb, vwb, owb, nfeat):
        d_model = h.shape[-1]
        q = linear(h[..., :nfeat], qwb)
        k = linear(h[..., :nfeat], kwb)
        v = linear(h, vwb)
        scores = jnp.einsum('bsd,btd->bst', q, k) / (d_model ** 0.5)
        att = jax.nn.softmax(scores, axis=-1)
        out = jnp.einsum('bst,btd->bsd', att, v)
        return linear(out, owb)

    def ln(h, gb):
        g, b = gb
        mu = h.mean(-1, keepdims=True)
        var = h.var(-1, keepdims=True)
        return (h - mu) / jnp.sqrt(var + 1e-5) * g + b

    def ffn(h):
        return linear(jax.nn.relu(linear(h, params['lin1'])), params['lin2'])

    src2 = mhfsa(x + pos[None], params['l1_q'], params['l1_k'],
                 params['l1_v'], params['l1_o'], num_features_to_use)
    x = ln(x + src2, params['norm1'])
    x = ln(x + jnp.cumsum(ffn(x), axis=1), params['norm2'])
    src2 = mhfsa(x, params['l2_q'], params['l2_k'],
                 params['l2_v'], params['l2_o'], x.shape[-1])
    x = ln(x + src2, params['norm2'])
    x = ln(x + ffn(x), params['norm2'])
    return x


# ----------------------------------------------------------------------------
# Deterministic synthetic parameters (same shapes as the nn.Module)
# ----------------------------------------------------------------------------

def sinusoid_table(n_pos, d_hid, T=1000):
    pos = np.arange(n_pos)[:, None].astype(np.float64)
    hid = np.arange(d_hid)[None, :]
    table = pos / np.power(T, 2 * (hid // 2) / d_hid)
    table = np.array(table)
    table[:, 0::2] = np.sin(table[:, 0::2])
    table[:, 1::2] = np.cos(table[:, 1::2])
    return jnp.asarray(table, dtype=jnp.float32)


def init_params(key, input_dim=4, d_model=4, dim_feedforward=8,
                num_features_to_use=2, max_seq_len=1000):
    keys = iter(jax.random.split(key, 32))

    def lin(n_out, n_in):
        w = jax.random.normal(next(keys), (n_out, n_in), jnp.float32) * 0.3
        b = jax.random.normal(next(keys), (n_out,), jnp.float32) * 0.1
        return (w, b)   # torch convention: W is (out, in)

    return {
        'pos_table': sinusoid_table(max_seq_len, input_dim),
        'l1_q': lin(d_model, num_features_to_use),
        'l1_k': lin(d_model, num_features_to_use),
        'l1_v': lin(d_model, d_model),
        'l1_o': lin(d_model, d_model),
        'l2_q': lin(d_model, d_model),
        'l2_k': lin(d_model, d_model),
        'l2_v': lin(d_model, d_model),
        'l2_o': lin(d_model, d_model),
        'lin1': lin(dim_feedforward, d_model),
        'lin2': lin(d_model, dim_feedforward),
        'norm1': (jnp.ones((d_model,), jnp.float32),
                  jnp.zeros((d_model,), jnp.float32)),
        'norm2': (jnp.ones((d_model,), jnp.float32),
                  jnp.zeros((d_model,), jnp.float32)),
    }


if __name__ == "__main__":
    B, S, INPUT_DIM = 2, 8, 4   # d_model == input_dim == 4, nhead=1 (defaults)
    key = jax.random.PRNGKey(0)
    k_x, k_p = jax.random.split(key)

    src = jax.random.normal(k_x, (B, S, INPUT_DIM), jnp.float32)
    params = init_params(k_p, input_dim=INPUT_DIM, d_model=INPUT_DIM,
                         dim_feedforward=8, num_features_to_use=2,
                         max_seq_len=1000)

    out = custom_encoder_forward(src, params, num_features_to_use=2)
    out = jax.block_until_ready(out)

    ref = reference_forward(src, params, num_features_to_use=2)
    # Tolerance covers the approximate EUP reciprocal in the softmax
    # denominator (LayerNorm is now exact two-pass).
    np.testing.assert_allclose(np.asarray(out), np.asarray(ref),
                               rtol=5e-3, atol=5e-3)

    print("KERNEL_OK")
</pallas_src>

<mosaic_0001>
module attributes {stable_mosaic.version = 11 : i64} {
  func.func @_encoder_kernel(%arg0: i32, %arg1: memref<2x8x4xf32, #tpu.memory_space<vmem>>, %arg2: memref<48x128xf32, #tpu.memory_space<vmem>>, %arg3: memref<2x8x4xf32, #tpu.memory_space<vmem>>) attributes {dimension_semantics = [#tpu.dimension_semantics<parallel>], iteration_bounds = array<i64: 1>, scalar_prefetch = 0 : i64, scratch_operands = 0 : i64, tpu.core_type = #tpu.core_type<tc>, window_params = [{transform_indices = @transform_0, window_bounds = array<i64: 2, 8, 4>}, {pipeline_mode = #tpu.pipeline_mode<synchronous>, transform_indices = @transform_1, window_bounds = array<i64: 48, 128>}, {transform_indices = @transform_2, window_bounds = array<i64: 2, 8, 4>}]} {
    %c0 = arith.constant 0 : index
    %c0_0 = arith.constant 0 : index
    %c0_1 = arith.constant 0 : index
    %0 = vector.load %arg1[%c0, %c0_0, %c0_1] : memref<2x8x4xf32, #tpu.memory_space<vmem>>, vector<2x8x4xf32>
    %c0_2 = arith.constant 0 : index
    %c0_3 = arith.constant 0 : index
    %1 = vector.load %arg2[%c0_2, %c0_3] : memref<48x128xf32, #tpu.memory_space<vmem>>, vector<48x128xf32>
    %2 = vector.extract_strided_slice %1 {offsets = [0, 0], sizes = [8, 4], strides = [1, 1]} : vector<48x128xf32> to vector<8x4xf32>
    %3 = vector.extract_strided_slice %1 {offsets = [8, 0], sizes = [4, 12], strides = [1, 1]} : vector<48x128xf32> to vector<4x12xf32>
    %4 = vector.extract_strided_slice %1 {offsets = [12, 0], sizes = [4, 4], strides = [1, 1]} : vector<48x128xf32> to vector<4x4xf32>
    %5 = vector.extract_strided_slice %1 {offsets = [16, 0], sizes = [4, 12], strides = [1, 1]} : vector<48x128xf32> to vector<4x12xf32>
    %6 = vector.extract_strided_slice %1 {offsets = [20, 0], sizes = [4, 4], strides = [1, 1]} : vector<48x128xf32> to vector<4x4xf32>
    %7 = vector.extract_strided_slice %1 {offsets = [24, 0], sizes = [4, 8], strides = [1, 1]} : vector<48x128xf32> to vector<4x8xf32>
    %8 = vector.extract_strided_slice %1 {offsets = [28, 0], sizes = [8, 4], strides = [1, 1]} : vector<48x128xf32> to vector<8x4xf32>
    %9 = vector.extract_strided_slice %1 {offsets = [36, 0], sizes = [1, 12], strides = [1, 1]} : vector<48x128xf32> to vector<1x12xf32>
    %10 = vector.extract_strided_slice %1 {offsets = [37, 0], sizes = [1, 4], strides = [1, 1]} : vector<48x128xf32> to vector<1x4xf32>
    %11 = vector.extract_strided_slice %1 {offsets = [38, 0], sizes = [1, 12], strides = [1, 1]} : vector<48x128xf32> to vector<1x12xf32>
    %12 = vector.extract_strided_slice %1 {offsets = [39, 0], sizes = [1, 4], strides = [1, 1]} : vector<48x128xf32> to vector<1x4xf32>
    %13 = vector.extract_strided_slice %1 {offsets = [40, 0], sizes = [1, 8], strides = [1, 1]} : vector<48x128xf32> to vector<1x8xf32>
    %14 = vector.extract_strided_slice %1 {offsets = [41, 0], sizes = [1, 4], strides = [1, 1]} : vector<48x128xf32> to vector<1x4xf32>
    %15 = vector.extract_strided_slice %1 {offsets = [42, 0], sizes = [1, 4], strides = [1, 1]} : vector<48x128xf32> to vector<1x4xf32>
    %16 = vector.extract_strided_slice %1 {offsets = [43, 0], sizes = [1, 4], strides = [1, 1]} : vector<48x128xf32> to vector<1x4xf32>
    %17 = vector.extract_strided_slice %1 {offsets = [44, 0], sizes = [1, 4], strides = [1, 1]} : vector<48x128xf32> to vector<1x4xf32>
    %18 = vector.extract_strided_slice %1 {offsets = [45, 0], sizes = [1, 4], strides = [1, 1]} : vector<48x128xf32> to vector<1x4xf32>
    %19 = tpu.iota {dimensions = array<i32: 0>} : vector<8x8xi32>
    %20 = tpu.iota {dimensions = array<i32: 1>} : vector<8x8xi32>
    %21 = arith.cmpi sge, %19, %20 : vector<8x8xi32>
    %22 = arith.extui %21 : vector<8x8xi1> to vector<8x8xi32>
    %23 = arith.sitofp %22 : vector<8x8xi32> to vector<8x8xf32>
    %24 = vector.shape_cast %23 : vector<8x8xf32> to vector<1x8x8xf32>
    %25 = vector.broadcast %24 : vector<1x8x8xf32> to vector<2x8x8xf32>
    %26 = vector.shape_cast %2 : vector<8x4xf32> to vector<1x8x4xf32>
    %27 = vector.broadcast %26 : vector<1x8x4xf32> to vector<2x8x4xf32>
    %28 = arith.addf %0, %27 : vector<2x8x4xf32>
    %29 = vector.extract_strided_slice %28 {offsets = [0, 0, 0], sizes = [2, 8, 1], strides = [1, 1, 1]} : vector<2x8x4xf32> to vector<2x8x1xf32>
    %30 = vector.extract_strided_slice %3 {offsets = [0, 0], sizes = [1, 12], strides = [1, 1]} : vector<4x12xf32> to vector<1x12xf32>
    %31 = vector.shape_cast %30 : vector<1x12xf32> to vector<1x1x12xf32>
    %32 = vector.broadcast %29 : vector<2x8x1xf32> to vector<2x8x12xf32>
    %33 = vector.broadcast %31 : vector<1x1x12xf32> to vector<2x8x12xf32>
    %34 = arith.mulf %32, %33 : vector<2x8x12xf32>
    %35 = vector.extract_strided_slice %28 {offsets = [0, 0, 1], sizes = [2, 8, 1], strides = [1, 1, 1]} : vector<2x8x4xf32> to vector<2x8x1xf32>
    %36 = vector.extract_strided_slice %3 {offsets = [1, 0], sizes = [1, 12], strides = [1, 1]} : vector<4x12xf32> to vector<1x12xf32>
    %37 = vector.shape_cast %36 : vector<1x12xf32> to vector<1x1x12xf32>
    %38 = vector.broadcast %35 : vector<2x8x1xf32> to vector<2x8x12xf32>
    %39 = vector.broadcast %37 : vector<1x1x12xf32> to vector<2x8x12xf32>
    %40 = arith.mulf %38, %39 : vector<2x8x12xf32>
    %41 = arith.addf %34, %40 : vector<2x8x12xf32>
    %42 = vector.extract_strided_slice %28 {offsets = [0, 0, 2], sizes = [2, 8, 1], strides = [1, 1, 1]} : vector<2x8x4xf32> to vector<2x8x1xf32>
    %43 = vector.extract_strided_slice %3 {offsets = [2, 0], sizes = [1, 12], strides = [1, 1]} : vector<4x12xf32> to vector<1x12xf32>
    %44 = vector.shape_cast %43 : vector<1x12xf32> to vector<1x1x12xf32>
    %45 = vector.broadcast %42 : vector<2x8x1xf32> to vector<2x8x12xf32>
    %46 = vector.broadcast %44 : vector<1x1x12xf32> to vector<2x8x12xf32>
    %47 = arith.mulf %45, %46 : vector<2x8x12xf32>
    %48 = arith.addf %41, %47 : vector<2x8x12xf32>
    %49 = vector.extract_strided_slice %28 {offsets = [0, 0, 3], sizes = [2, 8, 1], strides = [1, 1, 1]} : vector<2x8x4xf32> to vector<2x8x1xf32>
    %50 = vector.extract_strided_slice %3 {offsets = [3, 0], sizes = [1, 12], strides = [1, 1]} : vector<4x12xf32> to vector<1x12xf32>
    %51 = vector.shape_cast %50 : vector<1x12xf32> to vector<1x1x12xf32>
    %52 = vector.broadcast %49 : vector<2x8x1xf32> to vector<2x8x12xf32>
    %53 = vector.broadcast %51 : vector<1x1x12xf32> to vector<2x8x12xf32>
    %54 = arith.mulf %52, %53 : vector<2x8x12xf32>
    %55 = arith.addf %48, %54 : vector<2x8x12xf32>
    %56 = vector.shape_cast %9 : vector<1x12xf32> to vector<1x1x12xf32>
    %57 = vector.broadcast %56 : vector<1x1x12xf32> to vector<2x8x12xf32>
    %58 = arith.addf %55, %57 : vector<2x8x12xf32>
    %59 = vector.extract_strided_slice %58 {offsets = [0, 0, 0], sizes = [2, 8, 4], strides = [1, 1, 1]} : vector<2x8x12xf32> to vector<2x8x4xf32>
    %60 = vector.extract_strided_slice %58 {offsets = [0, 0, 4], sizes = [2, 8, 4], strides = [1, 1, 1]} : vector<2x8x12xf32> to vector<2x8x4xf32>
    %61 = vector.extract_strided_slice %58 {offsets = [0, 0, 8], sizes = [2, 8, 4], strides = [1, 1, 1]} : vector<2x8x12xf32> to vector<2x8x4xf32>
    "tpu.trace_start"() <{level = 10 : i32, message = "bqd,bkd->bqk"}> : () -> ()
    %cst = arith.constant dense<0.000000e+00> : vector<2x8x8xf32>
    %62 = tpu.matmul %59, %60, %cst {dimension_numbers = #tpu.dot_dimension_numbers<[2], [2], [1], [1], [0, 0, 0, 1, 1, 1], [0], [0]>} : vector<2x8x4xf32>, vector<2x8x4xf32>, vector<2x8x8xf32> -> vector<2x8x8xf32>
    "tpu.trace_stop"() : () -> ()
    %cst_4 = arith.constant 5.000000e-01 : f32
    %63 = vector.broadcast %cst_4 : f32 to vector<2x8x8xf32>
    %64 = arith.mulf %62, %63 : vector<2x8x8xf32>
    %cst_5 = arith.constant dense<0xFF800000> : vector<2x8xf32>
    %65 = vector.multi_reduction <maximumf>, %64, %cst_5 [2] : vector<2x8x8xf32> to vector<2x8xf32>
    %66 = vector.shape_cast %65 : vector<2x8xf32> to vector<2x8x1xf32>
    %67 = vector.broadcast %66 : vector<2x8x1xf32> to vector<2x8x8xf32>
    %68 = arith.subf %64, %67 : vector<2x8x8xf32>
    %69 = math.exp %68 : vector<2x8x8xf32>
    %cst_6 = arith.constant dense<0.000000e+00> : vector<2x8xf32>
    %70 = vector.multi_reduction <add>, %69, %cst_6 [2] : vector<2x8x8xf32> to vector<2x8xf32>
    %71 = vector.shape_cast %70 : vector<2x8xf32> to vector<2x8x1xf32>
    %72 = tpu.reciprocal %71 {approx = true} : vector<2x8x1xf32> -> vector<2x8x1xf32>
    %73 = vector.broadcast %72 : vector<2x8x1xf32> to vector<2x8x8xf32>
    %74 = arith.mulf %69, %73 : vector<2x8x8xf32>
    "tpu.trace_start"() <{level = 10 : i32, message = "bqk,bkd->bqd"}> : () -> ()
    %cst_7 = arith.constant dense<0.000000e+00> : vector<2x8x4xf32>
    %75 = tpu.matmul %74, %61, %cst_7 {dimension_numbers = #tpu.dot_dimension_numbers<[2], [1], [1], [2], [0, 0, 0, 1, 1, 2], [0], [0]>} : vector<2x8x8xf32>, vector<2x8x4xf32>, vector<2x8x4xf32> -> vector<2x8x4xf32>
    "tpu.trace_stop"() : () -> ()
    %76 = vector.extract_strided_slice %75 {offsets = [0, 0, 0], sizes = [2, 8, 1], strides = [1, 1, 1]} : vector<2x8x4xf32> to vector<2x8x1xf32>
    %77 = vector.extract_strided_slice %4 {offsets = [0, 0], sizes = [1, 4], strides = [1, 1]} : vector<4x4xf32> to vector<1x4xf32>
    %78 = vector.shape_cast %77 : vector<1x4xf32> to vector<1x1x4xf32>
    %79 = vector.broadcast %76 : vector<2x8x1xf32> to vector<2x8x4xf32>
    %80 = vector.broadcast %78 : vector<1x1x4xf32> to vector<2x8x4xf32>
    %81 = arith.mulf %79, %80 : vector<2x8x4xf32>
    %82 = vector.extract_strided_slice %75 {offsets = [0, 0, 1], sizes = [2, 8, 1], strides = [1, 1, 1]} : vector<2x8x4xf32> to vector<2x8x1xf32>
    %83 = vector.extract_strided_slice %4 {offsets = [1, 0], sizes = [1, 4], strides = [1, 1]} : vector<4x4xf32> to vector<1x4xf32>
    %84 = vector.shape_cast %83 : vector<1x4xf32> to vector<1x1x4xf32>
    %85 = vector.broadcast %82 : vector<2x8x1xf32> to vector<2x8x4xf32>
    %86 = vector.broadcast %84 : vector<1x1x4xf32> to vector<2x8x4xf32>
    %87 = arith.mulf %85, %86 : vector<2x8x4xf32>
    %88 = arith.addf %81, %87 : vector<2x8x4xf32>
    %89 = vector.extract_strided_slice %75 {offsets = [0, 0, 2], sizes = [2, 8, 1], strides = [1, 1, 1]} : vector<2x8x4xf32> to vector<2x8x1xf32>
    %90 = vector.extract_strided_slice %4 {offsets = [2, 0], sizes = [1, 4], strides = [1, 1]} : vector<4x4xf32> to vector<1x4xf32>
    %91 = vector.shape_cast %90 : vector<1x4xf32> to vector<1x1x4xf32>
    %92 = vector.broadcast %89 : vector<2x8x1xf32> to vector<2x8x4xf32>
    %93 = vector.broadcast %91 : vector<1x1x4xf32> to vector<2x8x4xf32>
    %94 = arith.mulf %92, %93 : vector<2x8x4xf32>
    %95 = arith.addf %88, %94 : vector<2x8x4xf32>
    %96 = vector.extract_strided_slice %75 {offsets = [0, 0, 3], sizes = [2, 8, 1], strides = [1, 1, 1]} : vector<2x8x4xf32> to vector<2x8x1xf32>
    %97 = vector.extract_strided_slice %4 {offsets = [3, 0], sizes = [1, 4], strides = [1, 1]} : vector<4x4xf32> to vector<1x4xf32>
    %98 = vector.shape_cast %97 : vector<1x4xf32> to vector<1x1x4xf32>
    %99 = vector.broadcast %96 : vector<2x8x1xf32> to vector<2x8x4xf32>
    %100 = vector.broadcast %98 : vector<1x1x4xf32> to vector<2x8x4xf32>
    %101 = arith.mulf %99, %100 : vector<2x8x4xf32>
    %102 = arith.addf %95, %101 : vector<2x8x4xf32>
    %103 = vector.shape_cast %10 : vector<1x4xf32> to vector<1x1x4xf32>
    %104 = vector.broadcast %103 : vector<1x1x4xf32> to vector<2x8x4xf32>
    %105 = arith.addf %102, %104 : vector<2x8x4xf32>
    %106 = arith.addf %0, %105 : vector<2x8x4xf32>
    %cst_8 = arith.constant dense<0.000000e+00> : vector<2x8xf32>
    %107 = vector.multi_reduction <add>, %106, %cst_8 [2] : vector<2x8x4xf32> to vector<2x8xf32>
    %108 = vector.shape_cast %107 : vector<2x8xf32> to vector<2x8x1xf32>
    %cst_9 = arith.constant 4.000000e+00 : f32
    %109 = vector.broadcast %cst_9 : f32 to vector<2x8x1xf32>
    %110 = arith.divf %108, %109 : vector<2x8x1xf32>
    %111 = vector.broadcast %110 : vector<2x8x1xf32> to vector<2x8x4xf32>
    %112 = arith.subf %106, %111 : vector<2x8x4xf32>
    %113 = arith.mulf %112, %112 : vector<2x8x4xf32>
    %cst_10 = arith.constant dense<0.000000e+00> : vector<2x8xf32>
    %114 = vector.multi_reduction <add>, %113, %cst_10 [2] : vector<2x8x4xf32> to vector<2x8xf32>
    %115 = vector.shape_cast %114 : vector<2x8xf32> to vector<2x8x1xf32>
    %cst_11 = arith.constant 4.000000e+00 : f32
    %116 = vector.broadcast %cst_11 : f32 to vector<2x8x1xf32>
    %117 = arith.divf %115, %116 : vector<2x8x1xf32>
    %cst_12 = arith.constant 9.99999974E-6 : f32
    %118 = vector.broadcast %cst_12 : f32 to vector<2x8x1xf32>
    %119 = arith.addf %117, %118 : vector<2x8x1xf32>
    %120 = math.rsqrt %119 : vector<2x8x1xf32>
    %121 = vector.broadcast %120 : vector<2x8x1xf32> to vector<2x8x4xf32>
    %122 = arith.mulf %112, %121 : vector<2x8x4xf32>
    %123 = vector.shape_cast %15 : vector<1x4xf32> to vector<1x1x4xf32>
    %124 = vector.broadcast %123 : vector<1x1x4xf32> to vector<2x8x4xf32>
    %125 = arith.mulf %122, %124 : vector<2x8x4xf32>
    %126 = vector.shape_cast %16 : vector<1x4xf32> to vector<1x1x4xf32>
    %127 = vector.broadcast %126 : vector<1x1x4xf32> to vector<2x8x4xf32>
    %128 = arith.addf %125, %127 : vector<2x8x4xf32>
    %129 = vector.extract_strided_slice %128 {offsets = [0, 0, 0], sizes = [2, 8, 1], strides = [1, 1, 1]} : vector<2x8x4xf32> to vector<2x8x1xf32>
    %130 = vector.extract_strided_slice %7 {offsets = [0, 0], sizes = [1, 8], strides = [1, 1]} : vector<4x8xf32> to vector<1x8xf32>
    %131 = vector.shape_cast %130 : vector<1x8xf32> to vector<1x1x8xf32>
    %132 = vector.broadcast %129 : vector<2x8x1xf32> to vector<2x8x8xf32>
    %133 = vector.broadcast %131 : vector<1x1x8xf32> to vector<2x8x8xf32>
    %134 = arith.mulf %132, %133 : vector<2x8x8xf32>
    %135 = vector.extract_strided_slice %128 {offsets = [0, 0, 1], sizes = [2, 8, 1], strides = [1, 1, 1]} : vector<2x8x4xf32> to vector<2x8x1xf32>
    %136 = vector.extract_strided_slice %7 {offsets = [1, 0], sizes = [1, 8], strides = [1, 1]} : vector<4x8xf32> to vector<1x8xf32>
    %137 = vector.shape_cast %136 : vector<1x8xf32> to vector<1x1x8xf32>
    %138 = vector.broadcast %135 : vector<2x8x1xf32> to vector<2x8x8xf32>
    %139 = vector.broadcast %137 : vector<1x1x8xf32> to vector<2x8x8xf32>
    %140 = arith.mulf %138, %139 : vector<2x8x8xf32>
    %141 = arith.addf %134, %140 : vector<2x8x8xf32>
    %142 = vector.extract_strided_slice %128 {offsets = [0, 0, 2], sizes = [2, 8, 1], strides = [1, 1, 1]} : vector<2x8x4xf32> to vector<2x8x1xf32>
    %143 = vector.extract_strided_slice %7 {offsets = [2, 0], sizes = [1, 8], strides = [1, 1]} : vector<4x8xf32> to vector<1x8xf32>
    %144 = vector.shape_cast %143 : vector<1x8xf32> to vector<1x1x8xf32>
    %145 = vector.broadcast %142 : vector<2x8x1xf32> to vector<2x8x8xf32>
    %146 = vector.broadcast %144 : vector<1x1x8xf32> to vector<2x8x8xf32>
    %147 = arith.mulf %145, %146 : vector<2x8x8xf32>
    %148 = arith.addf %141, %147 : vector<2x8x8xf32>
    %149 = vector.extract_strided_slice %128 {offsets = [0, 0, 3], sizes = [2, 8, 1], strides = [1, 1, 1]} : vector<2x8x4xf32> to vector<2x8x1xf32>
    %150 = vector.extract_strided_slice %7 {offsets = [3, 0], sizes = [1, 8], strides = [1, 1]} : vector<4x8xf32> to vector<1x8xf32>
    %151 = vector.shape_cast %150 : vector<1x8xf32> to vector<1x1x8xf32>
    %152 = vector.broadcast %149 : vector<2x8x1xf32> to vector<2x8x8xf32>
    %153 = vector.broadcast %151 : vector<1x1x8xf32> to vector<2x8x8xf32>
    %154 = arith.mulf %152, %153 : vector<2x8x8xf32>
    %155 = arith.addf %148, %154 : vector<2x8x8xf32>
    %156 = vector.shape_cast %13 : vector<1x8xf32> to vector<1x1x8xf32>
    %157 = vector.broadcast %156 : vector<1x1x8xf32> to vector<2x8x8xf32>
    %158 = arith.addf %155, %157 : vector<2x8x8xf32>
    %cst_13 = arith.constant 0.000000e+00 : f32
    %159 = vector.broadcast %cst_13 : f32 to vector<2x8x8xf32>
    %160 = arith.maximumf %158, %159 : vector<2x8x8xf32>
    %161 = vector.extract_strided_slice %160 {offsets = [0, 0, 0], sizes = [2, 8, 1], strides = [1, 1, 1]} : vector<2x8x8xf32> to vector<2x8x1xf32>
    %162 = vector.extract_strided_slice %8 {offsets = [0, 0], sizes = [1, 4], strides = [1, 1]} : vector<8x4xf32> to vector<1x4xf32>
    %163 = vector.shape_cast %162 : vector<1x4xf32> to vector<1x1x4xf32>
    %164 = vector.broadcast %161 : vector<2x8x1xf32> to vector<2x8x4xf32>
    %165 = vector.broadcast %163 : vector<1x1x4xf32> to vector<2x8x4xf32>
    %166 = arith.mulf %164, %165 : vector<2x8x4xf32>
    %167 = vector.extract_strided_slice %160 {offsets = [0, 0, 1], sizes = [2, 8, 1], strides = [1, 1, 1]} : vector<2x8x8xf32> to vector<2x8x1xf32>
    %168 = vector.extract_strided_slice %8 {offsets = [1, 0], sizes = [1, 4], strides = [1, 1]} : vector<8x4xf32> to vector<1x4xf32>
    %169 = vector.shape_cast %168 : vector<1x4xf32> to vector<1x1x4xf32>
    %170 = vector.broadcast %167 : vector<2x8x1xf32> to vector<2x8x4xf32>
    %171 = vector.broadcast %169 : vector<1x1x4xf32> to vector<2x8x4xf32>
    %172 = arith.mulf %170, %171 : vector<2x8x4xf32>
    %173 = arith.addf %166, %172 : vector<2x8x4xf32>
    %174 = vector.extract_strided_slice %160 {offsets = [0, 0, 2], sizes = [2, 8, 1], strides = [1, 1, 1]} : vector<2x8x8xf32> to vector<2x8x1xf32>
    %175 = vector.extract_strided_slice %8 {offsets = [2, 0], sizes = [1, 4], strides = [1, 1]} : vector<8x4xf32> to vector<1x4xf32>
    %176 = vector.shape_cast %175 : vector<1x4xf32> to vector<1x1x4xf32>
    %177 = vector.broadcast %174 : vector<2x8x1xf32> to vector<2x8x4xf32>
    %178 = vector.broadcast %176 : vector<1x1x4xf32> to vector<2x8x4xf32>
    %179 = arith.mulf %177, %178 : vector<2x8x4xf32>
    %180 = arith.addf %173, %179 : vector<2x8x4xf32>
    %181 = vector.extract_strided_slice %160 {offsets = [0, 0, 3], sizes = [2, 8, 1], strides = [1, 1, 1]} : vector<2x8x8xf32> to vector<2x8x1xf32>
    %182 = vector.extract_strided_slice %8 {offsets = [3, 0], sizes = [1, 4], strides = [1, 1]} : vector<8x4xf32> to vector<1x4xf32>
    %183 = vector.shape_cast %182 : vector<1x4xf32> to vector<1x1x4xf32>
    %184 = vector.broadcast %181 : vector<2x8x1xf32> to vector<2x8x4xf32>
    %185 = vector.broadcast %183 : vector<1x1x4xf32> to vector<2x8x4xf32>
    %186 = arith.mulf %184, %185 : vector<2x8x4xf32>
    %187 = arith.addf %180, %186 : vector<2x8x4xf32>
    %188 = vector.extract_strided_slice %160 {offsets = [0, 0, 4], sizes = [2, 8, 1], strides = [1, 1, 1]} : vector<2x8x8xf32> to vector<2x8x1xf32>
    %189 = vector.extract_strided_slice %8 {offsets = [4, 0], sizes = [1, 4], strides = [1, 1]} : vector<8x4xf32> to vector<1x4xf32>
    %190 = vector.shape_cast %189 : vector<1x4xf32> to vector<1x1x4xf32>
    %191 = vector.broadcast %188 : vector<2x8x1xf32> to vector<2x8x4xf32>
    %192 = vector.broadcast %190 : vector<1x1x4xf32> to vector<2x8x4xf32>
    %193 = arith.mulf %191, %192 : vector<2x8x4xf32>
    %194 = arith.addf %187, %193 : vector<2x8x4xf32>
    %195 = vector.extract_strided_slice %160 {offsets = [0, 0, 5], sizes = [2, 8, 1], strides = [1, 1, 1]} : vector<2x8x8xf32> to vector<2x8x1xf32>
    %196 = vector.extract_strided_slice %8 {offsets = [5, 0], sizes = [1, 4], strides = [1, 1]} : vector<8x4xf32> to vector<1x4xf32>
    %197 = vector.shape_cast %196 : vector<1x4xf32> to vector<1x1x4xf32>
    %198 = vector.broadcast %195 : vector<2x8x1xf32> to vector<2x8x4xf32>
    %199 = vector.broadcast %197 : vector<1x1x4xf32> to vector<2x8x4xf32>
    %200 = arith.mulf %198, %199 : vector<2x8x4xf32>
    %201 = arith.addf %194, %200 : vector<2x8x4xf32>
    %202 = vector.extract_strided_slice %160 {offsets = [0, 0, 6], sizes = [2, 8, 1], strides = [1, 1, 1]} : vector<2x8x8xf32> to vector<2x8x1xf32>
    %203 = vector.extract_strided_slice %8 {offsets = [6, 0], sizes = [1, 4], strides = [1, 1]} : vector<8x4xf32> to vector<1x4xf32>
    %204 = vector.shape_cast %203 : vector<1x4xf32> to vector<1x1x4xf32>
    %205 = vector.broadcast %202 : vector<2x8x1xf32> to vector<2x8x4xf32>
    %206 = vector.broadcast %204 : vector<1x1x4xf32> to vector<2x8x4xf32>
    %207 = arith.mulf %205, %206 : vector<2x8x4xf32>
    %208 = arith.addf %201, %207 : vector<2x8x4xf32>
    %209 = vector.extract_strided_slice %160 {offsets = [0, 0, 7], sizes = [2, 8, 1], strides = [1, 1, 1]} : vector<2x8x8xf32> to vector<2x8x1xf32>
    %210 = vector.extract_strided_slice %8 {offsets = [7, 0], sizes = [1, 4], strides = [1, 1]} : vector<8x4xf32> to vector<1x4xf32>
    %211 = vector.shape_cast %210 : vector<1x4xf32> to vector<1x1x4xf32>
    %212 = vector.broadcast %209 : vector<2x8x1xf32> to vector<2x8x4xf32>
    %213 = vector.broadcast %211 : vector<1x1x4xf32> to vector<2x8x4xf32>
    %214 = arith.mulf %212, %213 : vector<2x8x4xf32>
    %215 = arith.addf %208, %214 : vector<2x8x4xf32>
    %216 = vector.shape_cast %14 : vector<1x4xf32> to vector<1x1x4xf32>
    %217 = vector.broadcast %216 : vector<1x1x4xf32> to vector<2x8x4xf32>
    %218 = arith.addf %215, %217 : vector<2x8x4xf32>
    "tpu.trace_start"() <{level = 10 : i32, message = "bqk,bkd->bqd"}> : () -> ()
    %cst_14 = arith.constant dense<0.000000e+00> : vector<2x8x4xf32>
    %219 = tpu.matmul %25, %218, %cst_14 {dimension_numbers = #tpu.dot_dimension_numbers<[2], [1], [1], [2], [0, 0, 0, 1, 1, 2], [0], [0]>} : vector<2x8x8xf32>, vector<2x8x4xf32>, vector<2x8x4xf32> -> vector<2x8x4xf32>
    "tpu.trace_stop"() : () -> ()
    %220 = arith.addf %128, %219 : vector<2x8x4xf32>
    %cst_15 = arith.constant dense<0.000000e+00> : vector<2x8xf32>
    %221 = vector.multi_reduction <add>, %220, %cst_15 [2] : vector<2x8x4xf32> to vector<2x8xf32>
    %222 = vector.shape_cast %221 : vector<2x8xf32> to vector<2x8x1xf32>
    %cst_16 = arith.constant 4.000000e+00 : f32
    %223 = vector.broadcast %cst_16 : f32 to vector<2x8x1xf32>
    %224 = arith.divf %222, %223 : vector<2x8x1xf32>
    %225 = vector.broadcast %224 : vector<2x8x1xf32> to vector<2x8x4xf32>
    %226 = arith.subf %220, %225 : vector<2x8x4xf32>
    %227 = arith.mulf %226, %226 : vector<2x8x4xf32>
    %cst_17 = arith.constant dense<0.000000e+00> : vector<2x8xf32>
    %228 = vector.multi_reduction <add>, %227, %cst_17 [2] : vector<2x8x4xf32> to vector<2x8xf32>
    %229 = vector.shape_cast %228 : vector<2x8xf32> to vector<2x8x1xf32>
    %cst_18 = arith.constant 4.000000e+00 : f32
    %230 = vector.broadcast %cst_18 : f32 to vector<2x8x1xf32>
    %231 = arith.divf %229, %230 : vector<2x8x1xf32>
    %cst_19 = arith.constant 9.99999974E-6 : f32
    %232 = vector.broadcast %cst_19 : f32 to vector<2x8x1xf32>
    %233 = arith.addf %231, %232 : vector<2x8x1xf32>
    %234 = math.rsqrt %233 : vector<2x8x1xf32>
    %235 = vector.broadcast %234 : vector<2x8x1xf32> to vector<2x8x4xf32>
    %236 = arith.mulf %226, %235 : vector<2x8x4xf32>
    %237 = vector.shape_cast %17 : vector<1x4xf32> to vector<1x1x4xf32>
    %238 = vector.broadcast %237 : vector<1x1x4xf32> to vector<2x8x4xf32>
    %239 = arith.mulf %236, %238 : vector<2x8x4xf32>
    %240 = vector.shape_cast %18 : vector<1x4xf32> to vector<1x1x4xf32>
    %241 = vector.broadcast %240 : vector<1x1x4xf32> to vector<2x8x4xf32>
    %242 = arith.addf %239, %241 : vector<2x8x4xf32>
    %243 = vector.extract_strided_slice %242 {offsets = [0, 0, 0], sizes = [2, 8, 1], strides = [1, 1, 1]} : vector<2x8x4xf32> to vector<2x8x1xf32>
    %244 = vector.extract_strided_slice %5 {offsets = [0, 0], sizes = [1, 12], strides = [1, 1]} : vector<4x12xf32> to vector<1x12xf32>
    %245 = vector.shape_cast %244 : vector<1x12xf32> to vector<1x1x12xf32>
    %246 = vector.broadcast %243 : vector<2x8x1xf32> to vector<2x8x12xf32>
    %247 = vector.broadcast %245 : vector<1x1x12xf32> to vector<2x8x12xf32>
    %248 = arith.mulf %246, %247 : vector<2x8x12xf32>
    %249 = vector.extract_strided_slice %242 {offsets = [0, 0, 1], sizes = [2, 8, 1], strides = [1, 1, 1]} : vector<2x8x4xf32> to vector<2x8x1xf32>
    %250 = vector.extract_strided_slice %5 {offsets = [1, 0], sizes = [1, 12], strides = [1, 1]} : vector<4x12xf32> to vector<1x12xf32>
    %251 = vector.shape_cast %250 : vector<1x12xf32> to vector<1x1x12xf32>
    %252 = vector.broadcast %249 : vector<2x8x1xf32> to vector<2x8x12xf32>
    %253 = vector.broadcast %251 : vector<1x1x12xf32> to vector<2x8x12xf32>
    %254 = arith.mulf %252, %253 : vector<2x8x12xf32>
    %255 = arith.addf %248, %254 : vector<2x8x12xf32>
    %256 = vector.extract_strided_slice %242 {offsets = [0, 0, 2], sizes = [2, 8, 1], strides = [1, 1, 1]} : vector<2x8x4xf32> to vector<2x8x1xf32>
    %257 = vector.extract_strided_slice %5 {offsets = [2, 0], sizes = [1, 12], strides = [1, 1]} : vector<4x12xf32> to vector<1x12xf32>
    %258 = vector.shape_cast %257 : vector<1x12xf32> to vector<1x1x12xf32>
    %259 = vector.broadcast %256 : vector<2x8x1xf32> to vector<2x8x12xf32>
    %260 = vector.broadcast %258 : vector<1x1x12xf32> to vector<2x8x12xf32>
    %261 = arith.mulf %259, %260 : vector<2x8x12xf32>
    %262 = arith.addf %255, %261 : vector<2x8x12xf32>
    %263 = vector.extract_strided_slice %242 {offsets = [0, 0, 3], sizes = [2, 8, 1], strides = [1, 1, 1]} : vector<2x8x4xf32> to vector<2x8x1xf32>
    %264 = vector.extract_strided_slice %5 {offsets = [3, 0], sizes = [1, 12], strides = [1, 1]} : vector<4x12xf32> to vector<1x12xf32>
    %265 = vector.shape_cast %264 : vector<1x12xf32> to vector<1x1x12xf32>
    %266 = vector.broadcast %263 : vector<2x8x1xf32> to vector<2x8x12xf32>
    %267 = vector.broadcast %265 : vector<1x1x12xf32> to vector<2x8x12xf32>
    %268 = arith.mulf %266, %267 : vector<2x8x12xf32>
    %269 = arith.addf %262, %268 : vector<2x8x12xf32>
    %270 = vector.shape_cast %11 : vector<1x12xf32> to vector<1x1x12xf32>
    %271 = vector.broadcast %270 : vector<1x1x12xf32> to vector<2x8x12xf32>
    %272 = arith.addf %269, %271 : vector<2x8x12xf32>
    %273 = vector.extract_strided_slice %272 {offsets = [0, 0, 0], sizes = [2, 8, 4], strides = [1, 1, 1]} : vector<2x8x12xf32> to vector<2x8x4xf32>
    %274 = vector.extract_strided_slice %272 {offsets = [0, 0, 4], sizes = [2, 8, 4], strides = [1, 1, 1]} : vector<2x8x12xf32> to vector<2x8x4xf32>
    %275 = vector.extract_strided_slice %272 {offsets = [0, 0, 8], sizes = [2, 8, 4], strides = [1, 1, 1]} : vector<2x8x12xf32> to vector<2x8x4xf32>
    "tpu.trace_start"() <{level = 10 : i32, message = "bqd,bkd->bqk"}> : () -> ()
    %cst_20 = arith.constant dense<0.000000e+00> : vector<2x8x8xf32>
    %276 = tpu.matmul %273, %274, %cst_20 {dimension_numbers = #tpu.dot_dimension_numbers<[2], [2], [1], [1], [0, 0, 0, 1, 1, 1], [0], [0]>} : vector<2x8x4xf32>, vector<2x8x4xf32>, vector<2x8x8xf32> -> vector<2x8x8xf32>
    "tpu.trace_stop"() : () -> ()
    %cst_21 = arith.constant 5.000000e-01 : f32
    %277 = vector.broadcast %cst_21 : f32 to vector<2x8x8xf32>
    %278 = arith.mulf %276, %277 : vector<2x8x8xf32>
    %cst_22 = arith.constant dense<0xFF800000> : vector<2x8xf32>
    %279 = vector.multi_reduction <maximumf>, %278, %cst_22 [2] : vector<2x8x8xf32> to vector<2x8xf32>
    %280 = vector.shape_cast %279 : vector<2x8xf32> to vector<2x8x1xf32>
    %281 = vector.broadcast %280 : vector<2x8x1xf32> to vector<2x8x8xf32>
    %282 = arith.subf %278, %281 : vector<2x8x8xf32>
    %283 = math.exp %282 : vector<2x8x8xf32>
    %cst_23 = arith.constant dense<0.000000e+00> : vector<2x8xf32>
    %284 = vector.multi_reduction <add>, %283, %cst_23 [2] : vector<2x8x8xf32> to vector<2x8xf32>
    %285 = vector.shape_cast %284 : vector<2x8xf32> to vector<2x8x1xf32>
    %286 = tpu.reciprocal %285 {approx = true} : vector<2x8x1xf32> -> vector<2x8x1xf32>
    %287 = vector.broadcast %286 : vector<2x8x1xf32> to vector<2x8x8xf32>
    %288 = arith.mulf %283, %287 : vector<2x8x8xf32>
    "tpu.trace_start"() <{level = 10 : i32, message = "bqk,bkd->bqd"}> : () -> ()
    %cst_24 = arith.constant dense<0.000000e+00> : vector<2x8x4xf32>
    %289 = tpu.matmul %288, %275, %cst_24 {dimension_numbers = #tpu.dot_dimension_numbers<[2], [1], [1], [2], [0, 0, 0, 1, 1, 2], [0], [0]>} : vector<2x8x8xf32>, vector<2x8x4xf32>, vector<2x8x4xf32> -> vector<2x8x4xf32>
    "tpu.trace_stop"() : () -> ()
    %290 = vector.extract_strided_slice %289 {offsets = [0, 0, 0], sizes = [2, 8, 1], strides = [1, 1, 1]} : vector<2x8x4xf32> to vector<2x8x1xf32>
    %291 = vector.extract_strided_slice %6 {offsets = [0, 0], sizes = [1, 4], strides = [1, 1]} : vector<4x4xf32> to vector<1x4xf32>
    %292 = vector.shape_cast %291 : vector<1x4xf32> to vector<1x1x4xf32>
    %293 = vector.broadcast %290 : vector<2x8x1xf32> to vector<2x8x4xf32>
    %294 = vector.broadcast %292 : vector<1x1x4xf32> to vector<2x8x4xf32>
    %295 = arith.mulf %293, %294 : vector<2x8x4xf32>
    %296 = vector.extract_strided_slice %289 {offsets = [0, 0, 1], sizes = [2, 8, 1], strides = [1, 1, 1]} : vector<2x8x4xf32> to vector<2x8x1xf32>
    %297 = vector.extract_strided_slice %6 {offsets = [1, 0], sizes = [1, 4], strides = [1, 1]} : vector<4x4xf32> to vector<1x4xf32>
    %298 = vector.shape_cast %297 : vector<1x4xf32> to vector<1x1x4xf32>
    %299 = vector.broadcast %296 : vector<2x8x1xf32> to vector<2x8x4xf32>
    %300 = vector.broadcast %298 : vector<1x1x4xf32> to vector<2x8x4xf32>
    %301 = arith.mulf %299, %300 : vector<2x8x4xf32>
    %302 = arith.addf %295, %301 : vector<2x8x4xf32>
    %303 = vector.extract_strided_slice %289 {offsets = [0, 0, 2], sizes = [2, 8, 1], strides = [1, 1, 1]} : vector<2x8x4xf32> to vector<2x8x1xf32>
    %304 = vector.extract_strided_slice %6 {offsets = [2, 0], sizes = [1, 4], strides = [1, 1]} : vector<4x4xf32> to vector<1x4xf32>
    %305 = vector.shape_cast %304 : vector<1x4xf32> to vector<1x1x4xf32>
    %306 = vector.broadcast %303 : vector<2x8x1xf32> to vector<2x8x4xf32>
    %307 = vector.broadcast %305 : vector<1x1x4xf32> to vector<2x8x4xf32>
    %308 = arith.mulf %306, %307 : vector<2x8x4xf32>
    %309 = arith.addf %302, %308 : vector<2x8x4xf32>
    %310 = vector.extract_strided_slice %289 {offsets = [0, 0, 3], sizes = [2, 8, 1], strides = [1, 1, 1]} : vector<2x8x4xf32> to vector<2x8x1xf32>
    %311 = vector.extract_strided_slice %6 {offsets = [3, 0], sizes = [1, 4], strides = [1, 1]} : vector<4x4xf32> to vector<1x4xf32>
    %312 = vector.shape_cast %311 : vector<1x4xf32> to vector<1x1x4xf32>
    %313 = vector.broadcast %310 : vector<2x8x1xf32> to vector<2x8x4xf32>
    %314 = vector.broadcast %312 : vector<1x1x4xf32> to vector<2x8x4xf32>
    %315 = arith.mulf %313, %314 : vector<2x8x4xf32>
    %316 = arith.addf %309, %315 : vector<2x8x4xf32>
    %317 = vector.shape_cast %12 : vector<1x4xf32> to vector<1x1x4xf32>
    %318 = vector.broadcast %317 : vector<1x1x4xf32> to vector<2x8x4xf32>
    %319 = arith.addf %316, %318 : vector<2x8x4xf32>
    %320 = arith.addf %242, %319 : vector<2x8x4xf32>
    %cst_25 = arith.constant dense<0.000000e+00> : vector<2x8xf32>
    %321 = vector.multi_reduction <add>, %320, %cst_25 [2] : vector<2x8x4xf32> to vector<2x8xf32>
    %322 = vector.shape_cast %321 : vector<2x8xf32> to vector<2x8x1xf32>
    %cst_26 = arith.constant 4.000000e+00 : f32
    %323 = vector.broadcast %cst_26 : f32 to vector<2x8x1xf32>
    %324 = arith.divf %322, %323 : vector<2x8x1xf32>
    %325 = vector.broadcast %324 : vector<2x8x1xf32> to vector<2x8x4xf32>
    %326 = arith.subf %320, %325 : vector<2x8x4xf32>
    %327 = arith.mulf %326, %326 : vector<2x8x4xf32>
    %cst_27 = arith.constant dense<0.000000e+00> : vector<2x8xf32>
    %328 = vector.multi_reduction <add>, %327, %cst_27 [2] : vector<2x8x4xf32> to vector<2x8xf32>
    %329 = vector.shape_cast %328 : vector<2x8xf32> to vector<2x8x1xf32>
    %cst_28 = arith.constant 4.000000e+00 : f32
    %330 = vector.broadcast %cst_28 : f32 to vector<2x8x1xf32>
    %331 = arith.divf %329, %330 : vector<2x8x1xf32>
    %cst_29 = arith.constant 9.99999974E-6 : f32
    %332 = vector.broadcast %cst_29 : f32 to vector<2x8x1xf32>
    %333 = arith.addf %331, %332 : vector<2x8x1xf32>
    %334 = math.rsqrt %333 : vector<2x8x1xf32>
    %335 = vector.broadcast %334 : vector<2x8x1xf32> to vector<2x8x4xf32>
    %336 = arith.mulf %326, %335 : vector<2x8x4xf32>
    %337 = vector.shape_cast %17 : vector<1x4xf32> to vector<1x1x4xf32>
    %338 = vector.broadcast %337 : vector<1x1x4xf32> to vector<2x8x4xf32>
    %339 = arith.mulf %336, %338 : vector<2x8x4xf32>
    %340 = vector.shape_cast %18 : vector<1x4xf32> to vector<1x1x4xf32>
    %341 = vector.broadcast %340 : vector<1x1x4xf32> to vector<2x8x4xf32>
    %342 = arith.addf %339, %341 : vector<2x8x4xf32>
    %343 = vector.extract_strided_slice %342 {offsets = [0, 0, 0], sizes = [2, 8, 1], strides = [1, 1, 1]} : vector<2x8x4xf32> to vector<2x8x1xf32>
    %344 = vector.extract_strided_slice %7 {offsets = [0, 0], sizes = [1, 8], strides = [1, 1]} : vector<4x8xf32> to vector<1x8xf32>
    %345 = vector.shape_cast %344 : vector<1x8xf32> to vector<1x1x8xf32>
    %346 = vector.broadcast %343 : vector<2x8x1xf32> to vector<2x8x8xf32>
    %347 = vector.broadcast %345 : vector<1x1x8xf32> to vector<2x8x8xf32>
    %348 = arith.mulf %346, %347 : vector<2x8x8xf32>
    %349 = vector.extract_strided_slice %342 {offsets = [0, 0, 1], sizes = [2, 8, 1], strides = [1, 1, 1]} : vector<2x8x4xf32> to vector<2x8x1xf32>
    %350 = vector.extract_strided_slice %7 {offsets = [1, 0], sizes = [1, 8], strides = [1, 1]} : vector<4x8xf32> to vector<1x8xf32>
    %351 = vector.shape_cast %350 : vector<1x8xf32> to vector<1x1x8xf32>
    %352 = vector.broadcast %349 : vector<2x8x1xf32> to vector<2x8x8xf32>
    %353 = vector.broadcast %351 : vector<1x1x8xf32> to vector<2x8x8xf32>
    %354 = arith.mulf %352, %353 : vector<2x8x8xf32>
    %355 = arith.addf %348, %354 : vector<2x8x8xf32>
    %356 = vector.extract_strided_slice %342 {offsets = [0, 0, 2], sizes = [2, 8, 1], strides = [1, 1, 1]} : vector<2x8x4xf32> to vector<2x8x1xf32>
    %357 = vector.extract_strided_slice %7 {offsets = [2, 0], sizes = [1, 8], strides = [1, 1]} : vector<4x8xf32> to vector<1x8xf32>
    %358 = vector.shape_cast %357 : vector<1x8xf32> to vector<1x1x8xf32>
    %359 = vector.broadcast %356 : vector<2x8x1xf32> to vector<2x8x8xf32>
    %360 = vector.broadcast %358 : vector<1x1x8xf32> to vector<2x8x8xf32>
    %361 = arith.mulf %359, %360 : vector<2x8x8xf32>
    %362 = arith.addf %355, %361 : vector<2x8x8xf32>
    %363 = vector.extract_strided_slice %342 {offsets = [0, 0, 3], sizes = [2, 8, 1], strides = [1, 1, 1]} : vector<2x8x4xf32> to vector<2x8x1xf32>
    %364 = vector.extract_strided_slice %7 {offsets = [3, 0], sizes = [1, 8], strides = [1, 1]} : vector<4x8xf32> to vector<1x8xf32>
    %365 = vector.shape_cast %364 : vector<1x8xf32> to vector<1x1x8xf32>
    %366 = vector.broadcast %363 : vector<2x8x1xf32> to vector<2x8x8xf32>
    %367 = vector.broadcast %365 : vector<1x1x8xf32> to vector<2x8x8xf32>
    %368 = arith.mulf %366, %367 : vector<2x8x8xf32>
    %369 = arith.addf %362, %368 : vector<2x8x8xf32>
    %370 = vector.shape_cast %13 : vector<1x8xf32> to vector<1x1x8xf32>
    %371 = vector.broadcast %370 : vector<1x1x8xf32> to vector<2x8x8xf32>
    %372 = arith.addf %369, %371 : vector<2x8x8xf32>
    %cst_30 = arith.constant 0.000000e+00 : f32
    %373 = vector.broadcast %cst_30 : f32 to vector<2x8x8xf32>
    %374 = arith.maximumf %372, %373 : vector<2x8x8xf32>
    %375 = vector.extract_strided_slice %374 {offsets = [0, 0, 0], sizes = [2, 8, 1], strides = [1, 1, 1]} : vector<2x8x8xf32> to vector<2x8x1xf32>
    %376 = vector.extract_strided_slice %8 {offsets = [0, 0], sizes = [1, 4], strides = [1, 1]} : vector<8x4xf32> to vector<1x4xf32>
    %377 = vector.shape_cast %376 : vector<1x4xf32> to vector<1x1x4xf32>
    %378 = vector.broadcast %375 : vector<2x8x1xf32> to vector<2x8x4xf32>
    %379 = vector.broadcast %377 : vector<1x1x4xf32> to vector<2x8x4xf32>
    %380 = arith.mulf %378, %379 : vector<2x8x4xf32>
    %381 = vector.extract_strided_slice %374 {offsets = [0, 0, 1], sizes = [2, 8, 1], strides = [1, 1, 1]} : vector<2x8x8xf32> to vector<2x8x1xf32>
    %382 = vector.extract_strided_slice %8 {offsets = [1, 0], sizes = [1, 4], strides = [1, 1]} : vector<8x4xf32> to vector<1x4xf32>
    %383 = vector.shape_cast %382 : vector<1x4xf32> to vector<1x1x4xf32>
    %384 = vector.broadcast %381 : vector<2x8x1xf32> to vector<2x8x4xf32>
    %385 = vector.broadcast %383 : vector<1x1x4xf32> to vector<2x8x4xf32>
    %386 = arith.mulf %384, %385 : vector<2x8x4xf32>
    %387 = arith.addf %380, %386 : vector<2x8x4xf32>
    %388 = vector.extract_strided_slice %374 {offsets = [0, 0, 2], sizes = [2, 8, 1], strides = [1, 1, 1]} : vector<2x8x8xf32> to vector<2x8x1xf32>
    %389 = vector.extract_strided_slice %8 {offsets = [2, 0], sizes = [1, 4], strides = [1, 1]} : vector<8x4xf32> to vector<1x4xf32>
    %390 = vector.shape_cast %389 : vector<1x4xf32> to vector<1x1x4xf32>
    %391 = vector.broadcast %388 : vector<2x8x1xf32> to vector<2x8x4xf32>
    %392 = vector.broadcast %390 : vector<1x1x4xf32> to vector<2x8x4xf32>
    %393 = arith.mulf %391, %392 : vector<2x8x4xf32>
    %394 = arith.addf %387, %393 : vector<2x8x4xf32>
    %395 = vector.extract_strided_slice %374 {offsets = [0, 0, 3], sizes = [2, 8, 1], strides = [1, 1, 1]} : vector<2x8x8xf32> to vector<2x8x1xf32>
    %396 = vector.extract_strided_slice %8 {offsets = [3, 0], sizes = [1, 4], strides = [1, 1]} : vector<8x4xf32> to vector<1x4xf32>
    %397 = vector.shape_cast %396 : vector<1x4xf32> to vector<1x1x4xf32>
    %398 = vector.broadcast %395 : vector<2x8x1xf32> to vector<2x8x4xf32>
    %399 = vector.broadcast %397 : vector<1x1x4xf32> to vector<2x8x4xf32>
    %400 = arith.mulf %398, %399 : vector<2x8x4xf32>
    %401 = arith.addf %394, %400 : vector<2x8x4xf32>
    %402 = vector.extract_strided_slice %374 {offsets = [0, 0, 4], sizes = [2, 8, 1], strides = [1, 1, 1]} : vector<2x8x8xf32> to vector<2x8x1xf32>
    %403 = vector.extract_strided_slice %8 {offsets = [4, 0], sizes = [1, 4], strides = [1, 1]} : vector<8x4xf32> to vector<1x4xf32>
    %404 = vector.shape_cast %403 : vector<1x4xf32> to vector<1x1x4xf32>
    %405 = vector.broadcast %402 : vector<2x8x1xf32> to vector<2x8x4xf32>
    %406 = vector.broadcast %404 : vector<1x1x4xf32> to vector<2x8x4xf32>
    %407 = arith.mulf %405, %406 : vector<2x8x4xf32>
    %408 = arith.addf %401, %407 : vector<2x8x4xf32>
    %409 = vector.extract_strided_slice %374 {offsets = [0, 0, 5], sizes = [2, 8, 1], strides = [1, 1, 1]} : vector<2x8x8xf32> to vector<2x8x1xf32>
    %410 = vector.extract_strided_slice %8 {offsets = [5, 0], sizes = [1, 4], strides = [1, 1]} : vector<8x4xf32> to vector<1x4xf32>
    %411 = vector.shape_cast %410 : vector<1x4xf32> to vector<1x1x4xf32>
    %412 = vector.broadcast %409 : vector<2x8x1xf32> to vector<2x8x4xf32>
    %413 = vector.broadcast %411 : vector<1x1x4xf32> to vector<2x8x4xf32>
    %414 = arith.mulf %412, %413 : vector<2x8x4xf32>
    %415 = arith.addf %408, %414 : vector<2x8x4xf32>
    %416 = vector.extract_strided_slice %374 {offsets = [0, 0, 6], sizes = [2, 8, 1], strides = [1, 1, 1]} : vector<2x8x8xf32> to vector<2x8x1xf32>
    %417 = vector.extract_strided_slice %8 {offsets = [6, 0], sizes = [1, 4], strides = [1, 1]} : vector<8x4xf32> to vector<1x4xf32>
    %418 = vector.shape_cast %417 : vector<1x4xf32> to vector<1x1x4xf32>
    %419 = vector.broadcast %416 : vector<2x8x1xf32> to vector<2x8x4xf32>
    %420 = vector.broadcast %418 : vector<1x1x4xf32> to vector<2x8x4xf32>
    %421 = arith.mulf %419, %420 : vector<2x8x4xf32>
    %422 = arith.addf %415, %421 : vector<2x8x4xf32>
    %423 = vector.extract_strided_slice %374 {offsets = [0, 0, 7], sizes = [2, 8, 1], strides = [1, 1, 1]} : vector<2x8x8xf32> to vector<2x8x1xf32>
    %424 = vector.extract_strided_slice %8 {offsets = [7, 0], sizes = [1, 4], strides = [1, 1]} : vector<8x4xf32> to vector<1x4xf32>
    %425 = vector.shape_cast %424 : vector<1x4xf32> to vector<1x1x4xf32>
    %426 = vector.broadcast %423 : vector<2x8x1xf32> to vector<2x8x4xf32>
    %427 = vector.broadcast %425 : vector<1x1x4xf32> to vector<2x8x4xf32>
    %428 = arith.mulf %426, %427 : vector<2x8x4xf32>
    %429 = arith.addf %422, %428 : vector<2x8x4xf32>
    %430 = vector.shape_cast %14 : vector<1x4xf32> to vector<1x1x4xf32>
    %431 = vector.broadcast %430 : vector<1x1x4xf32> to vector<2x8x4xf32>
    %432 = arith.addf %429, %431 : vector<2x8x4xf32>
    %433 = arith.addf %342, %432 : vector<2x8x4xf32>
    %cst_31 = arith.constant dense<0.000000e+00> : vector<2x8xf32>
    %434 = vector.multi_reduction <add>, %433, %cst_31 [2] : vector<2x8x4xf32> to vector<2x8xf32>
    %435 = vector.shape_cast %434 : vector<2x8xf32> to vector<2x8x1xf32>
    %cst_32 = arith.constant 4.000000e+00 : f32
    %436 = vector.broadcast %cst_32 : f32 to vector<2x8x1xf32>
    %437 = arith.divf %435, %436 : vector<2x8x1xf32>
    %438 = vector.broadcast %437 : vector<2x8x1xf32> to vector<2x8x4xf32>
    %439 = arith.subf %433, %438 : vector<2x8x4xf32>
    %440 = arith.mulf %439, %439 : vector<2x8x4xf32>
    %cst_33 = arith.constant dense<0.000000e+00> : vector<2x8xf32>
    %441 = vector.multi_reduction <add>, %440, %cst_33 [2] : vector<2x8x4xf32> to vector<2x8xf32>
    %442 = vector.shape_cast %441 : vector<2x8xf32> to vector<2x8x1xf32>
    %cst_34 = arith.constant 4.000000e+00 : f32
    %443 = vector.broadcast %cst_34 : f32 to vector<2x8x1xf32>
    %444 = arith.divf %442, %443 : vector<2x8x1xf32>
    %cst_35 = arith.constant 9.99999974E-6 : f32
    %445 = vector.broadcast %cst_35 : f32 to vector<2x8x1xf32>
    %446 = arith.addf %444, %445 : vector<2x8x1xf32>
    %447 = math.rsqrt %446 : vector<2x8x1xf32>
    %448 = vector.broadcast %447 : vector<2x8x1xf32> to vector<2x8x4xf32>
    %449 = arith.mulf %439, %448 : vector<2x8x4xf32>
    %450 = vector.shape_cast %17 : vector<1x4xf32> to vector<1x1x4xf32>
    %451 = vector.broadcast %450 : vector<1x1x4xf32> to vector<2x8x4xf32>
    %452 = arith.mulf %449, %451 : vector<2x8x4xf32>
    %453 = vector.shape_cast %18 : vector<1x4xf32> to vector<1x1x4xf32>
    %454 = vector.broadcast %453 : vector<1x1x4xf32> to vector<2x8x4xf32>
    %455 = arith.addf %452, %454 : vector<2x8x4xf32>
    %c0_36 = arith.constant 0 : index
    %c0_37 = arith.constant 0 : index
    %c0_38 = arith.constant 0 : index
    %456 = vector.load %arg3[%c0_36, %c0_37, %c0_38] : memref<2x8x4xf32, #tpu.memory_space<vmem>>, vector<2x8x4xf32>
    tpu.vector_store %arg3[%c0_36, %c0_37, %c0_38], %455 {strides = array<i32>} : memref<2x8x4xf32, #tpu.memory_space<vmem>>, vector<2x8x4xf32>,
    return
  }
  func.func @transform_0(%arg0: i32) -> (i32, i32, i32) {
    %c0_i32 = arith.constant 0 : i32
    %c0_i32_0 = arith.constant 0 : i32
    %c0_i32_1 = arith.constant 0 : i32
    return %arg0, %c0_i32, %c0_i32_0 : i32, i32, i32
  }
  func.func @transform_1(%arg0: i32) -> (i32, i32) {
    %c0_i32 = arith.constant 0 : i32
    %c0_i32_0 = arith.constant 0 : i32
    %c0_i32_1 = arith.constant 0 : i32
    return %c0_i32, %c0_i32_0 : i32, i32
  }
  func.func @transform_2(%arg0: i32) -> (i32, i32, i32) {
    %c0_i32 = arith.constant 0 : i32
    %c0_i32_0 = arith.constant 0 : i32
    %c0_i32_1 = arith.constant 0 : i32
    return %arg0, %c0_i32, %c0_i32_0 : i32, i32, i32
  }
}

</mosaic_0001>

<llo_original>
// kernel: tpu_custom_call.1
$region0: #{tpu_custom_call.1}
  #allocation0 [shape = 'u32[]', space=smem, size = 0x4, offset = 0x4, fixed_abs, tag = 'smem constant byte address 0x4 - core index']
  #allocation1 [shape = 'u32[144,128]{1,0:T(1,128)}', space=vmem, size = 0x12000, scoped, tag = 'internal scratch']
  %s0 = inlined_call_operand.vmem [shape: f32[2,8,4], index: 0, kind: input, shape index: {}]
  %s1 = inlined_call_operand.hbm [shape: f32[48,128], index: 1, kind: input, shape index: {}]
  %s2 = inlined_call_operand.vmem [shape: f32[2,8,4], index: 2, kind: output, shape index: {}]
  %s3 = sld [smem:[#allocation0]]
  $region22: #{tpu_custom_call.1} parent=0
    _
  %s5 = ssub.s32 1, %s3
  %s6 = scalar_select 0, %s5, %s3
  $region1: #{tpu_custom_call.1} parent=0
    #allocation2 [shape = 'u8[24576]{0}', space=vmem, size = 0x6000, scoped, tag = 'input window, operand 1, single buffered']
    #allocation3 [shape = 's32[1]{0}', space=sflag, size = 0x4, scoped, tag = 'scoped memory for tpu_custom_call.1']
    %7 = vsyncpa [#allocation3], 0
    // Predicated region
    $region2: #{tpu_custom_call.1} parent=1 // pred_check
      _
    $region3: #{tpu_custom_call.1} parent=1 // pred_check_branch
      %9 = sbr.rel (0) target = $region5
    $region4: #{tpu_custom_call.1} parent=1 // pred_region
      _
    $region5: #{tpu_custom_call.1} parent=1 // pred_fallthru
      _
    // Predicated region
    $region6: #{tpu_custom_call.1} parent=1 // pred_check
      _
    $region7: #{tpu_custom_call.1} parent=1 // pred_check_branch
      %11 = sbr.rel (0) target = $region9
    $region8: #{tpu_custom_call.1} parent=1 // pred_region
      %s13 = ssub.s32 768, 768
      %14 = vsyncadd [#allocation3], %s13
      %s15 = sshll.u32 [#allocation2], 4
      %s16 = int_to_ptr.vmem [resolvable:$true] %s15
      %21 = dma.hbm_to_vmem [thread:$0]  %s1, 768, %s16, [#allocation3], 128, 128, 8
    $region9: #{tpu_custom_call.1} parent=1 // pred_fallthru
      _
    // Predicated region
    $region10: #{tpu_custom_call.1} parent=1 // pred_check
      _
    $region11: #{tpu_custom_call.1} parent=1 // pred_check_branch
      %23 = sbr.rel (0) target = $region13
    $region12: #{tpu_custom_call.1} parent=1 // pred_region
      %24 = dma.done [#allocation3], 768
    $region13: #{tpu_custom_call.1} parent=1 // pred_fallthru
      _
    %v25 = vld [vmem:[%s0] sm:$0xff]
    %v26 = vld [vmem:[%s0 + $0x8] sm:$0xff]
    %v27 = vld [vmem:[#allocation2] sm:$0xff]
    %v28 = vld [vmem:[#allocation2 + $0x8] sm:$0xff]
    %v29 = vld [vmem:[#allocation2 + $0x10] sm:$0xff]
    %v30 = vld [vmem:[#allocation2 + $0x18] sm:$0xff]
    %v31 = vld [vmem:[#allocation2 + $0x20] sm:$0xff]
    %v32 = vld [vmem:[#allocation2 + $0x28] sm:$0xff]
    %v33 = vlaneseq
    %v34 = vshrl.u32 %v33, 7
    %v35 = vlaneseq
    %v36 = vand.u32 %v35, 127
    %vm37 = vcmp.ge.s32.totalorder %v34, %v36
    %v38 = vsel %vm37, 1, 0
    %v39 = vcvt.s32.f32 %v38
    %v40 = vadd.f32 %v25, %v27
    %v41 = vadd.f32 %v26, %v27
    %43 = vset.pattern.permute.xlu0 0
    %44 = vperm.xlu0 %43, %v40
    %v45 = vpop.permute.xlu0 %44
    %48 = vset.pattern.permute.xlu0 0
    %49 = vperm.xlu0 %48, %v41
    %v50 = vpop.permute.xlu0 %49
    %v52 = vlaneseq
    %v53 = vshrl.u32 %v52, 7
    %v54 = vsub.s32 0, %v53
    %v55 = vrot.slane %v28, %v54
    %v56 = vmul.f32 %v45, %v55
    %v57 = vmul.f32 %v50, %v55
    %58 = vset.pattern.permute.xlu0 1
    %59 = vperm.xlu0 %58, %v40
    %v60 = vpop.permute.xlu0 %59
    %62 = vset.pattern.permute.xlu0 1
    %63 = vperm.xlu0 %62, %v41
    %v64 = vpop.permute.xlu0 %63
    %v66 = vlaneseq
    %v67 = vshrl.u32 %v66, 7
    %v68 = vsub.s32 1, %v67
    %v69 = vrot.slane %v28, %v68
    %v70 = vmul.f32 %v60, %v69
    %v71 = vmul.f32 %v64, %v69
    %v72 = vadd.f32 %v56, %v70
    %v73 = vadd.f32 %v57, %v71
    %74 = vset.pattern.permute.xlu0 2
    %75 = vperm.xlu0 %74, %v40
    %v76 = vpop.permute.xlu0 %75
    %78 = vset.pattern.permute.xlu0 2
    %79 = vperm.xlu0 %78, %v41
    %v80 = vpop.permute.xlu0 %79
    %v82 = vlaneseq
    %v83 = vshrl.u32 %v82, 7
    %v84 = vsub.s32 2, %v83
    %v85 = vrot.slane %v28, %v84
    %v86 = vmul.f32 %v76, %v85
    %v87 = vmul.f32 %v80, %v85
    %v88 = vadd.f32 %v72, %v86
    %v89 = vadd.f32 %v73, %v87
    %90 = vset.pattern.permute.xlu0 3
    %91 = vperm.xlu0 %90, %v40
    %v92 = vpop.permute.xlu0 %91
    %94 = vset.pattern.permute.xlu0 3
    %95 = vperm.xlu0 %94, %v41
    %v96 = vpop.permute.xlu0 %95
    %v98 = vlaneseq
    %v99 = vshrl.u32 %v98, 7
    %v100 = vsub.s32 3, %v99
    %v101 = vrot.slane %v28, %v100
    %v102 = vmul.f32 %v92, %v101
    %v103 = vmul.f32 %v96, %v101
    %v104 = vadd.f32 %v88, %v102
    %v105 = vadd.f32 %v89, %v103
    %v106 = vlaneseq
    %v107 = vshrl.u32 %v106, 7
    %v108 = vsub.s32 4, %v107
    %v109 = vrot.slane %v31, %v108
    %v110 = vadd.f32 %v104, %v109
    %v111 = vadd.f32 %v105, %v109
    %113 = vrot.lane.b32.xlu0 %v110, 124
    %v114 = vpop.permute.xlu0 %113
    %vm115 = vcmask 31744
    %v116 = vsel %vm115, %v110, 0
    %v118 = vsel %vm115, %v114, 0
    %120 = vmatprep.subr.mxu0 0.0
    %121 = vmatpush1.xpose.msra.mxu0 %v118
    %122 = vmatprep.subr.mxu0 0.0
    %123 = vmatpush1.xpose.msra.mxu0 0.0
    %124 = vmatprep.subr.mxu0 0.0
    %125 = vmatpush1.xpose.msra.mxu0 0.0
    %126 = vmatprep.subr.mxu0 0.0
    %127 = vmatpush1.xpose.msra.mxu0 0.0
    %128 = vmatprep.subr.mxu0 0.0
    %129 = vmatpush1.xpose.msra.mxu0 0.0
    %130 = vmatprep.subr.mxu0 0.0
    %131 = vmatpush1.xpose.msra.mxu0 0.0
    %132 = vmatprep.subr.mxu0 0.0
    %133 = vmatpush1.xpose.msra.mxu0 0.0
    %134 = vmatprep.subr.mxu0 0.0
    %135 = vmatpush1.xpose.msra.mxu0 0.0
    %136 = vmatprep.subr.mxu0 0.0
    %137 = vmatpush1.xpose.msra.mxu0 0.0
    %138 = vmatprep.subr.mxu0 0.0
    %139 = vmatpush1.xpose.msra.mxu0 0.0
    %140 = vmatprep.subr.mxu0 0.0
    %141 = vmatpush1.xpose.msra.mxu0 0.0
    %142 = vmatprep.subr.mxu0 0.0
    %143 = vmatpush1.xpose.msra.mxu0 0.0
    %144 = vmatprep.subr.mxu0 0.0
    %145 = vmatpush1.xpose.msra.mxu0 0.0
    %146 = vmatprep.subr.mxu0 0.0
    %147 = vmatpush1.xpose.msra.mxu0 0.0
    %148 = vmatprep.subr.mxu0 0.0
    %149 = vmatpush1.xpose.msra.mxu0 0.0
    %150 = vmatprep.subr.mxu0 0.0
    %151 = vmatpush1.xpose.msra.mxu0 0.0
    %152 = vmatprep.subr.mxu0 0.0
    %153 = vmatpush1.xpose.msra.mxu0 0.0
    %154 = vmatprep.subr.mxu0 0.0
    %155 = vmatpush1.xpose.msra.mxu0 0.0
    %156 = vmatprep.subr.mxu0 0.0
    %157 = vmatpush1.xpose.msra.mxu0 0.0
    %158 = vmatprep.subr.mxu0 0.0
    %159 = vmatpush1.xpose.msra.mxu0 0.0
    %160 = vmatprep.subr.mxu0 0.0
    %161 = vmatpush1.xpose.msra.mxu0 0.0
    %162 = vmatprep.subr.mxu0 0.0
    %163 = vmatpush1.xpose.msra.mxu0 0.0
    %164 = vmatprep.subr.mxu0 0.0
    %165 = vmatpush1.xpose.msra.mxu0 0.0
    %166 = vmatprep.subr.mxu0 0.0
    %167 = vmatpush1.xpose.msra.mxu0 0.0
    %168 = vmatprep.subr.mxu0 0.0
    %169 = vmatpush1.xpose.msra.mxu0 0.0
    %170 = vmatprep.subr.mxu0 0.0
    %171 = vmatpush1.xpose.msra.mxu0 0.0
    %172 = vmatprep.subr.mxu0 0.0
    %173 = vmatpush1.xpose.msra.mxu0 0.0
    %174 = vmatprep.subr.mxu0 0.0
    %175 = vmatpush1.xpose.msra.mxu0 0.0
    %176 = vmatprep.subr.mxu0 0.0
    %177 = vmatpush1.xpose.msra.mxu0 0.0
    %178 = vmatprep.subr.mxu0 0.0
    %179 = vmatpush1.xpose.msra.mxu0 0.0
    %180 = vmatprep.subr.mxu0 0.0
    %181 = vmatpush1.xpose.msra.mxu0 0.0
    %182 = vmatprep.subr.mxu0 0.0
    %183 = vmatpush1.xpose.msra.mxu0 0.0
    %184 = vmatprep.mubr.f32.mxu0 0.0
    %185 = vmatmul.mubr.f32.gmra.mrb[0].mxu0 %v116
    %v186 = vpop.f32.mrb[0].mxu0
    %v187 = vadd.f32 0.0, %v186
    %v188 = vpop.f32.mrb[0].mxu0
    %189 = vdwg.mxu0
    %191 = vrot.lane.b32.xlu0 %v111, 124
    %v192 = vpop.permute.xlu0 %191
    %v193 = vsel %vm115, %v111, 0
    %v195 = vsel %vm115, %v192, 0
    %197 = vmatprep.subr.mxu0 0.0
    %198 = vmatpush1.xpose.msra.mxu0 %v195
    %199 = vmatprep.subr.mxu0 0.0
    %200 = vmatpush1.xpose.msra.mxu0 0.0
    %201 = vmatprep.subr.mxu0 0.0
    %202 = vmatpush1.xpose.msra.mxu0 0.0
    %203 = vmatprep.subr.mxu0 0.0
    %204 = vmatpush1.xpose.msra.mxu0 0.0
    %205 = vmatprep.subr.mxu0 0.0
    %206 = vmatpush1.xpose.msra.mxu0 0.0
    %207 = vmatprep.subr.mxu0 0.0
    %208 = vmatpush1.xpose.msra.mxu0 0.0
    %209 = vmatprep.subr.mxu0 0.0
    %210 = vmatpush1.xpose.msra.mxu0 0.0
    %211 = vmatprep.subr.mxu0 0.0
    %212 = vmatpush1.xpose.msra.mxu0 0.0
    %213 = vmatprep.subr.mxu0 0.0
    %214 = vmatpush1.xpose.msra.mxu0 0.0
    %215 = vmatprep.subr.mxu0 0.0
    %216 = vmatpush1.xpose.msra.mxu0 0.0
    %217 = vmatprep.subr.mxu0 0.0
    %218 = vmatpush1.xpose.msra.mxu0 0.0
    %219 = vmatprep.subr.mxu0 0.0
    %220 = vmatpush1.xpose.msra.mxu0 0.0
    %221 = vmatprep.subr.mxu0 0.0
    %222 = vmatpush1.xpose.msra.mxu0 0.0
    %223 = vmatprep.subr.mxu0 0.0
    %224 = vmatpush1.xpose.msra.mxu0 0.0
    %225 = vmatprep.subr.mxu0 0.0
    %226 = vmatpush1.xpose.msra.mxu0 0.0
    %227 = vmatprep.subr.mxu0 0.0
    %228 = vmatpush1.xpose.msra.mxu0 0.0
    %229 = vmatprep.subr.mxu0 0.0
    %230 = vmatpush1.xpose.msra.mxu0 0.0
    %231 = vmatprep.subr.mxu0 0.0
    %232 = vmatpush1.xpose.msra.mxu0 0.0
    %233 = vmatprep.subr.mxu0 0.0
    %234 = vmatpush1.xpose.msra.mxu0 0.0
    %235 = vmatprep.subr.mxu0 0.0
    %236 = vmatpush1.xpose.msra.mxu0 0.0
    %237 = vmatprep.subr.mxu0 0.0
    %238 = vmatpush1.xpose.msra.mxu0 0.0
    %239 = vmatprep.subr.mxu0 0.0
    %240 = vmatpush1.xpose.msra.mxu0 0.0
    %241 = vmatprep.subr.mxu0 0.0
    %242 = vmatpush1.xpose.msra.mxu0 0.0
    %243 = vmatprep.subr.mxu0 0.0
    %244 = vmatpush1.xpose.msra.mxu0 0.0
    %245 = vmatprep.subr.mxu0 0.0
    %246 = vmatpush1.xpose.msra.mxu0 0.0
    %247 = vmatprep.subr.mxu0 0.0
    %248 = vmatpush1.xpose.msra.mxu0 0.0
    %249 = vmatprep.subr.mxu0 0.0
    %250 = vmatpush1.xpose.msra.mxu0 0.0
    %251 = vmatprep.subr.mxu0 0.0
    %252 = vmatpush1.xpose.msra.mxu0 0.0
    %253 = vmatprep.subr.mxu0 0.0
    %254 = vmatpush1.xpose.msra.mxu0 0.0
    %255 = vmatprep.subr.mxu0 0.0
    %256 = vmatpush1.xpose.msra.mxu0 0.0
    %257 = vmatprep.subr.mxu0 0.0
    %258 = vmatpush1.xpose.msra.mxu0 0.0
    %259 = vmatprep.subr.mxu0 0.0
    %260 = vmatpush1.xpose.msra.mxu0 0.0
    %261 = vmatprep.mubr.f32.mxu0 0.0
    %262 = vmatmul.mubr.f32.gmra.mrb[0].mxu0 %v193
    %v263 = vpop.f32.mrb[0].mxu0
    %v264 = vadd.f32 0.0, %v263
    %v265 = vpop.f32.mrb[0].mxu0
    %266 = vdwg.mxu0
    %v267 = vmul.f32 %v187, 0.5
    %v268 = vmul.f32 %v264, 0.5
    %vm269 = vcmask 64512
    %v270 = vsel %vm269, %v267, -inf
    %271 = vmax.xlane.f32.xlu0 %v270
    %v272 = vpop.xlane.xlu0 %271
    %v273 = vsel %vm269, %v268, -inf
    %274 = vmax.xlane.f32.xlu0 %v273
    %v275 = vpop.xlane.xlu0 %274
    %v276 = vsub.f32 %v267, %v272
    %v277 = vsub.f32 %v268, %v275
    %v278 = vmul.f32 %v276, 1.442695
    %v279 = vpow.pop %v278
    %v280 = vmul.f32 %v277, 1.442695
    %v281 = vpow.pop %v280
    %v282 = vsel %vm269, %v279, 0.0
    %283 = vadd.xlane.f32.xlu0 %v282
    %v284 = vpop.xlane.xlu0 %283
    %v285 = vsel %vm269, %v281, 0.0
    %286 = vadd.xlane.f32.xlu0 %v285
    %v287 = vpop.xlane.xlu0 %286
    %v288 = vrcp.pop %v284
    %v289 = vrcp.pop %v287
    %v290 = vmul.f32 %v279, %v288
    %v291 = vmul.f32 %v281, %v289
    %292 = vrot.lane.b32.xlu0 %v110, 120
    %v293 = vpop.permute.xlu0 %292
    %v296 = vsel %vm269, %v290, 0
    %298 = vmatprep.subr.mxu0 0.0
    %299 = vmatpush1.msra.mxu0 %v293
    %300 = vmatprep.subr.mxu0 0.0
    %301 = vmatpush1.msra.mxu0 0.0
    %302 = vmatprep.subr.mxu0 0.0
    %303 = vmatpush1.msra.mxu0 0.0
    %304 = vmatprep.subr.mxu0 0.0
    %305 = vmatpush1.msra.mxu0 0.0
    %306 = vmatprep.subr.mxu0 0.0
    %307 = vmatpush1.msra.mxu0 0.0
    %308 = vmatprep.subr.mxu0 0.0
    %309 = vmatpush1.msra.mxu0 0.0
    %310 = vmatprep.subr.mxu0 0.0
    %311 = vmatpush1.msra.mxu0 0.0
    %312 = vmatprep.subr.mxu0 0.0
    %313 = vmatpush1.msra.mxu0 0.0
    %314 = vmatprep.subr.mxu0 0.0
    %315 = vmatpush1.msra.mxu0 0.0
    %316 = vmatprep.subr.mxu0 0.0
    %317 = vmatpush1.msra.mxu0 0.0
    %318 = vmatprep.subr.mxu0 0.0
    %319 = vmatpush1.msra.mxu0 0.0
    %320 = vmatprep.subr.mxu0 0.0
    %321 = vmatpush1.msra.mxu0 0.0
    %322 = vmatprep.subr.mxu0 0.0
    %323 = vmatpush1.msra.mxu0 0.0
    %324 = vmatprep.subr.mxu0 0.0
    %325 = vmatpush1.msra.mxu0 0.0
    %326 = vmatprep.subr.mxu0 0.0
    %327 = vmatpush1.msra.mxu0 0.0
    %328 = vmatprep.subr.mxu0 0.0
    %329 = vmatpush1.msra.mxu0 0.0
    %330 = vmatprep.subr.mxu0 0.0
    %331 = vmatpush1.msra.mxu0 0.0
    %332 = vmatprep.subr.mxu0 0.0
    %333 = vmatpush1.msra.mxu0 0.0
    %334 = vmatprep.subr.mxu0 0.0
    %335 = vmatpush1.msra.mxu0 0.0
    %336 = vmatprep.subr.mxu0 0.0
    %337 = vmatpush1.msra.mxu0 0.0
    %338 = vmatprep.subr.mxu0 0.0
    %339 = vmatpush1.msra.mxu0 0.0
    %340 = vmatprep.subr.mxu0 0.0
    %341 = vmatpush1.msra.mxu0 0.0
    %342 = vmatprep.subr.mxu0 0.0
    %343 = vmatpush1.msra.mxu0 0.0
    %344 = vmatprep.subr.mxu0 0.0
    %345 = vmatpush1.msra.mxu0 0.0
    %346 = vmatprep.subr.mxu0 0.0
    %347 = vmatpush1.msra.mxu0 0.0
    %348 = vmatprep.subr.mxu0 0.0
    %349 = vmatpush1.msra.mxu0 0.0
    %350 = vmatprep.subr.mxu0 0.0
    %351 = vmatpush1.msra.mxu0 0.0
    %352 = vmatprep.subr.mxu0 0.0
    %353 = vmatpush1.msra.mxu0 0.0
    %354 = vmatprep.subr.mxu0 0.0
    %355 = vmatpush1.msra.mxu0 0.0
    %356 = vmatprep.subr.mxu0 0.0
    %357 = vmatpush1.msra.mxu0 0.0
    %358 = vmatprep.subr.mxu0 0.0
    %359 = vmatpush1.msra.mxu0 0.0
    %360 = vmatprep.subr.mxu0 0.0
    %361 = vmatpush1.msra.mxu0 0.0
    %362 = vmatprep.mubr.f32.mxu0 0.0
    %363 = vmatmul.mubr.f32.gmra.mrb[0].mxu0 %v296
    %v364 = vpop.f32.mrb[0].mxu0
    %v365 = vadd.f32 0.0, %v364
    %v366 = vpop.f32.mrb[0].mxu0
    %367 = vdwg.mxu0
    %368 = vrot.lane.b32.xlu0 %v111, 120
    %v369 = vpop.permute.xlu0 %368
    %v372 = vsel %vm269, %v291, 0
    %374 = vmatprep.subr.mxu0 0.0
    %375 = vmatpush1.msra.mxu0 %v369
    %376 = vmatprep.subr.mxu0 0.0
    %377 = vmatpush1.msra.mxu0 0.0
    %378 = vmatprep.subr.mxu0 0.0
    %379 = vmatpush1.msra.mxu0 0.0
    %380 = vmatprep.subr.mxu0 0.0
    %381 = vmatpush1.msra.mxu0 0.0
    %382 = vmatprep.subr.mxu0 0.0
    %383 = vmatpush1.msra.mxu0 0.0
    %384 = vmatprep.subr.mxu0 0.0
    %385 = vmatpush1.msra.mxu0 0.0
    %386 = vmatprep.subr.mxu0 0.0
    %387 = vmatpush1.msra.mxu0 0.0
    %388 = vmatprep.subr.mxu0 0.0
    %389 = vmatpush1.msra.mxu0 0.0
    %390 = vmatprep.subr.mxu0 0.0
    %391 = vmatpush1.msra.mxu0 0.0
    %392 = vmatprep.subr.mxu0 0.0
    %393 = vmatpush1.msra.mxu0 0.0
    %394 = vmatprep.subr.mxu0 0.0
    %395 = vmatpush1.msra.mxu0 0.0
    %396 = vmatprep.subr.mxu0 0.0
    %397 = vmatpush1.msra.mxu0 0.0
    %398 = vmatprep.subr.mxu0 0.0
    %399 = vmatpush1.msra.mxu0 0.0
    %400 = vmatprep.subr.mxu0 0.0
    %401 = vmatpush1.msra.mxu0 0.0
    %402 = vmatprep.subr.mxu0 0.0
    %403 = vmatpush1.msra.mxu0 0.0
    %404 = vmatprep.subr.mxu0 0.0
    %405 = vmatpush1.msra.mxu0 0.0
    %406 = vmatprep.subr.mxu0 0.0
    %407 = vmatpush1.msra.mxu0 0.0
    %408 = vmatprep.subr.mxu0 0.0
    %409 = vmatpush1.msra.mxu0 0.0
    %410 = vmatprep.subr.mxu0 0.0
    %411 = vmatpush1.msra.mxu0 0.0
    %412 = vmatprep.subr.mxu0 0.0
    %413 = vmatpush1.msra.mxu0 0.0
    %414 = vmatprep.subr.mxu0 0.0
    %415 = vmatpush1.msra.mxu0 0.0
    %416 = vmatprep.subr.mxu0 0.0
    %417 = vmatpush1.msra.mxu0 0.0
    %418 = vmatprep.subr.mxu0 0.0
    %419 = vmatpush1.msra.mxu0 0.0
    %420 = vmatprep.subr.mxu0 0.0
    %421 = vmatpush1.msra.mxu0 0.0
    %422 = vmatprep.subr.mxu0 0.0
    %423 = vmatpush1.msra.mxu0 0.0
    %424 = vmatprep.subr.mxu0 0.0
    %425 = vmatpush1.msra.mxu0 0.0
    %426 = vmatprep.subr.mxu0 0.0
    %427 = vmatpush1.msra.mxu0 0.0
    %428 = vmatprep.subr.mxu0 0.0
    %429 = vmatpush1.msra.mxu0 0.0
    %430 = vmatprep.subr.mxu0 0.0
    %431 = vmatpush1.msra.mxu0 0.0
    %432 = vmatprep.subr.mxu0 0.0
    %433 = vmatpush1.msra.mxu0 0.0
    %434 = vmatprep.subr.mxu0 0.0
    %435 = vmatpush1.msra.mxu0 0.0
    %436 = vmatprep.subr.mxu0 0.0
    %437 = vmatpush1.msra.mxu0 0.0
    %438 = vmatprep.mubr.f32.mxu0 0.0
    %439 = vmatmul.mubr.f32.gmra.mrb[0].mxu0 %v372
    %v440 = vpop.f32.mrb[0].mxu0
    %v441 = vadd.f32 0.0, %v440
    %v442 = vpop.f32.mrb[0].mxu0
    %443 = vdwg.mxu0
    %445 = vset.pattern.permute.xlu0 0
    %446 = vperm.xlu0 %445, %v365
    %v447 = vpop.permute.xlu0 %446
    %450 = vset.pattern.permute.xlu0 0
    %451 = vperm.xlu0 %450, %v441
    %v452 = vpop.permute.xlu0 %451
    %v454 = vlaneseq
    %v455 = vshrl.u32 %v454, 7
    %v456 = vsub.s32 4, %v455
    %v457 = vrot.slane %v28, %v456
    %v458 = vmul.f32 %v447, %v457
    %v459 = vmul.f32 %v452, %v457
    %460 = vset.pattern.permute.xlu0 1
    %461 = vperm.xlu0 %460, %v365
    %v462 = vpop.permute.xlu0 %461
    %464 = vset.pattern.permute.xlu0 1
    %465 = vperm.xlu0 %464, %v441
    %v466 = vpop.permute.xlu0 %465
    %v468 = vlaneseq
    %v469 = vshrl.u32 %v468, 7
    %v470 = vsub.s32 5, %v469
    %v471 = vrot.slane %v28, %v470
    %v472 = vmul.f32 %v462, %v471
    %v473 = vmul.f32 %v466, %v471
    %v474 = vadd.f32 %v458, %v472
    %v475 = vadd.f32 %v459, %v473
    %476 = vset.pattern.permute.xlu0 2
    %477 = vperm.xlu0 %476, %v365
    %v478 = vpop.permute.xlu0 %477
    %480 = vset.pattern.permute.xlu0 2
    %481 = vperm.xlu0 %480, %v441
    %v482 = vpop.permute.xlu0 %481
    %v484 = vlaneseq
    %v485 = vshrl.u32 %v484, 7
    %v486 = vsub.s32 6, %v485
    %v487 = vrot.slane %v28, %v486
    %v488 = vmul.f32 %v478, %v487
    %v489 = vmul.f32 %v482, %v487
    %v490 = vadd.f32 %v474, %v488
    %v491 = vadd.f32 %v475, %v489
    %492 = vset.pattern.permute.xlu0 3
    %493 = vperm.xlu0 %492, %v365
    %v494 = vpop.permute.xlu0 %493
    %496 = vset.pattern.permute.xlu0 3
    %497 = vperm.xlu0 %496, %v441
    %v498 = vpop.permute.xlu0 %497
    %v500 = vlaneseq
    %v501 = vshrl.u32 %v500, 7
    %v502 = vsub.s32 7, %v501
    %v503 = vrot.slane %v28, %v502
    %v504 = vmul.f32 %v494, %v503
    %v505 = vmul.f32 %v498, %v503
    %v506 = vadd.f32 %v490, %v504
    %v507 = vadd.f32 %v491, %v505
    %v508 = vlaneseq
    %v509 = vshrl.u32 %v508, 7
    %v510 = vsub.s32 5, %v509
    %v511 = vrot.slane %v31, %v510
    %v512 = vadd.f32 %v506, %v511
    %v513 = vadd.f32 %v507, %v511
    %v514 = vadd.f32 %v25, %v512
    %v515 = vadd.f32 %v26, %v513
    %v516 = vsel %vm115, %v514, 0.0
    %517 = vadd.xlane.f32.xlu0 %v516
    %v518 = vpop.xlane.xlu0 %517
    %v519 = vsel %vm115, %v515, 0.0
    %520 = vadd.xlane.f32.xlu0 %v519
    %v521 = vpop.xlane.xlu0 %520
    %v522 = vrcp.pop 4.0
    %v523 = vmul.f32 %v518, %v522
    %v524 = vmul.f32 %v521, %v522
    %v525 = vsub.f32 %v514, %v523
    %v526 = vsub.f32 %v515, %v524
    %v527 = vmul.f32 %v525, %v525
    %v528 = vmul.f32 %v526, %v526
    %v529 = vsel %vm115, %v527, 0.0
    %530 = vadd.xlane.f32.xlu0 %v529
    %v531 = vpop.xlane.xlu0 %530
    %v532 = vsel %vm115, %v528, 0.0
    %533 = vadd.xlane.f32.xlu0 %v532
    %v534 = vpop.xlane.xlu0 %533
    %v535 = vmul.f32 %v531, %v522
    %v536 = vmul.f32 %v534, %v522
    %v537 = vadd.f32 %v535, 1e-05
    %v538 = vadd.f32 %v536, 1e-05
    %v539 = vrsqrt.pop %v537
    %v540 = vrsqrt.pop %v538
    %v541 = vmul.f32 %v525, %v539
    %v542 = vmul.f32 %v526, %v540
    %v543 = vlaneseq
    %v544 = vshrl.u32 %v543, 7
    %v545 = vsub.s32 2, %v544
    %v546 = vrot.slane %v32, %v545
    %v547 = vmul.f32 %v541, %v546
    %v548 = vmul.f32 %v542, %v546
    %v549 = vlaneseq
    %v550 = vshrl.u32 %v549, 7
    %v551 = vsub.s32 3, %v550
    %v552 = vrot.slane %v32, %v551
    %v553 = vadd.f32 %v547, %v552
    %v554 = vadd.f32 %v548, %v552
    %556 = vset.pattern.permute.xlu0 0
    %557 = vperm.xlu0 %556, %v553
    %v558 = vpop.permute.xlu0 %557
    %561 = vset.pattern.permute.xlu0 0
    %562 = vperm.xlu0 %561, %v554
    %v563 = vpop.permute.xlu0 %562
    %v565 = vlaneseq
    %v566 = vshrl.u32 %v565, 7
    %v567 = vsub.s32 0, %v566
    %v568 = vrot.slane %v30, %v567
    %v569 = vmul.f32 %v558, %v568
    %v570 = vmul.f32 %v563, %v568
    %571 = vset.pattern.permute.xlu0 1
    %572 = vperm.xlu0 %571, %v553
    %v573 = vpop.permute.xlu0 %572
    %575 = vset.pattern.permute.xlu0 1
    %576 = vperm.xlu0 %575, %v554
    %v577 = vpop.permute.xlu0 %576
    %v579 = vlaneseq
    %v580 = vshrl.u32 %v579, 7
    %v581 = vsub.s32 1, %v580
    %v582 = vrot.slane %v30, %v581
    %v583 = vmul.f32 %v573, %v582
    %v584 = vmul.f32 %v577, %v582
    %v585 = vadd.f32 %v569, %v583
    %v586 = vadd.f32 %v570, %v584
    %587 = vset.pattern.permute.xlu0 2
    %588 = vperm.xlu0 %587, %v553
    %v589 = vpop.permute.xlu0 %588
    %591 = vset.pattern.permute.xlu0 2
    %592 = vperm.xlu0 %591, %v554
    %v593 = vpop.permute.xlu0 %592
    %v595 = vlaneseq
    %v596 = vshrl.u32 %v595, 7
    %v597 = vsub.s32 2, %v596
    %v598 = vrot.slane %v30, %v597
    %v599 = vmul.f32 %v589, %v598
    %v600 = vmul.f32 %v593, %v598
    %v601 = vadd.f32 %v585, %v599
    %v602 = vadd.f32 %v586, %v600
    %603 = vset.pattern.permute.xlu0 3
    %604 = vperm.xlu0 %603, %v553
    %v605 = vpop.permute.xlu0 %604
    %607 = vset.pattern.permute.xlu0 3
    %608 = vperm.xlu0 %607, %v554
    %v609 = vpop.permute.xlu0 %608
    %v611 = vlaneseq
    %v612 = vshrl.u32 %v611, 7
    %v613 = vsub.s32 3, %v612
    %v614 = vrot.slane %v30, %v613
    %v615 = vmul.f32 %v605, %v614
    %v616 = vmul.f32 %v609, %v614
    %v617 = vadd.f32 %v601, %v615
    %v618 = vadd.f32 %v602, %v616
    %v619 = vlaneseq
    %v620 = vshrl.u32 %v619, 7
    %v621 = vsub.s32 0, %v620
    %v622 = vrot.slane %v32, %v621
    %v623 = vadd.f32 %v617, %v622
    %v624 = vadd.f32 %v618, %v622
    %v625 = vmax.f32 %v623, 0.0
    %v626 = vmax.f32 %v624, 0.0
    %628 = vset.pattern.permute.xlu0 0
    %629 = vperm.xlu0 %628, %v625
    %v630 = vpop.permute.xlu0 %629
    %633 = vset.pattern.permute.xlu0 0
    %634 = vperm.xlu0 %633, %v626
    %v635 = vpop.permute.xlu0 %634
    %v637 = vlaneseq
    %v638 = vshrl.u32 %v637, 7
    %v639 = vsub.s32 4, %v638
    %v640 = vrot.slane %v30, %v639
    %v641 = vmul.f32 %v630, %v640
    %v642 = vmul.f32 %v635, %v640
    %643 = vset.pattern.permute.xlu0 1
    %644 = vperm.xlu0 %643, %v625
    %v645 = vpop.permute.xlu0 %644
    %647 = vset.pattern.permute.xlu0 1
    %648 = vperm.xlu0 %647, %v626
    %v649 = vpop.permute.xlu0 %648
    %v651 = vlaneseq
    %v652 = vshrl.u32 %v651, 7
    %v653 = vsub.s32 5, %v652
    %v654 = vrot.slane %v30, %v653
    %v655 = vmul.f32 %v645, %v654
    %v656 = vmul.f32 %v649, %v654
    %v657 = vadd.f32 %v641, %v655
    %v658 = vadd.f32 %v642, %v656
    %659 = vset.pattern.permute.xlu0 2
    %660 = vperm.xlu0 %659, %v625
    %v661 = vpop.permute.xlu0 %660
    %663 = vset.pattern.permute.xlu0 2
    %664 = vperm.xlu0 %663, %v626
    %v665 = vpop.permute.xlu0 %664
    %v667 = vlaneseq
    %v668 = vshrl.u32 %v667, 7
    %v669 = vsub.s32 6, %v668
    %v670 = vrot.slane %v30, %v669
    %v671 = vmul.f32 %v661, %v670
    %v672 = vmul.f32 %v665, %v670
    %v673 = vadd.f32 %v657, %v671
    %v674 = vadd.f32 %v658, %v672
    %675 = vset.pattern.permute.xlu0 3
    %676 = vperm.xlu0 %675, %v625
    %v677 = vpop.permute.xlu0 %676
    %679 = vset.pattern.permute.xlu0 3
    %680 = vperm.xlu0 %679, %v626
    %v681 = vpop.permute.xlu0 %680
    %v683 = vlaneseq
    %v684 = vshrl.u32 %v683, 7
    %v685 = vsub.s32 7, %v684
    %v686 = vrot.slane %v30, %v685
    %v687 = vmul.f32 %v677, %v686
    %v688 = vmul.f32 %v681, %v686
    %v689 = vadd.f32 %v673, %v687
    %v690 = vadd.f32 %v674, %v688
    %691 = vset.pattern.permute.xlu0 4
    %692 = vperm.xlu0 %691, %v625
    %v693 = vpop.permute.xlu0 %692
    %695 = vset.pattern.permute.xlu0 4
    %696 = vperm.xlu0 %695, %v626
    %v697 = vpop.permute.xlu0 %696
    %v699 = vlaneseq
    %v700 = vshrl.u32 %v699, 7
    %v701 = vsub.s32 0, %v700
    %v702 = vrot.slane %v31, %v701
    %v703 = vmul.f32 %v693, %v702
    %v704 = vmul.f32 %v697, %v702
    %v705 = vadd.f32 %v689, %v703
    %v706 = vadd.f32 %v690, %v704
    %707 = vset.pattern.permute.xlu0 5
    %708 = vperm.xlu0 %707, %v625
    %v709 = vpop.permute.xlu0 %708
    %711 = vset.pattern.permute.xlu0 5
    %712 = vperm.xlu0 %711, %v626
    %v713 = vpop.permute.xlu0 %712
    %v715 = vlaneseq
    %v716 = vshrl.u32 %v715, 7
    %v717 = vsub.s32 1, %v716
    %v718 = vrot.slane %v31, %v717
    %v719 = vmul.f32 %v709, %v718
    %v720 = vmul.f32 %v713, %v718
    %v721 = vadd.f32 %v705, %v719
    %v722 = vadd.f32 %v706, %v720
    %723 = vset.pattern.permute.xlu0 6
    %724 = vperm.xlu0 %723, %v625
    %v725 = vpop.permute.xlu0 %724
    %727 = vset.pattern.permute.xlu0 6
    %728 = vperm.xlu0 %727, %v626
    %v729 = vpop.permute.xlu0 %728
    %v731 = vlaneseq
    %v732 = vshrl.u32 %v731, 7
    %v733 = vsub.s32 2, %v732
    %v734 = vrot.slane %v31, %v733
    %v735 = vmul.f32 %v725, %v734
    %v736 = vmul.f32 %v729, %v734
    %v737 = vadd.f32 %v721, %v735
    %v738 = vadd.f32 %v722, %v736
    %739 = vset.pattern.permute.xlu0 7
    %740 = vperm.xlu0 %739, %v625
    %v741 = vpop.permute.xlu0 %740
    %743 = vset.pattern.permute.xlu0 7
    %744 = vperm.xlu0 %743, %v626
    %v745 = vpop.permute.xlu0 %744
    %v747 = vlaneseq
    %v748 = vshrl.u32 %v747, 7
    %v749 = vsub.s32 3, %v748
    %v750 = vrot.slane %v31, %v749
    %v751 = vmul.f32 %v741, %v750
    %v752 = vmul.f32 %v745, %v750
    %v753 = vadd.f32 %v737, %v751
    %v754 = vadd.f32 %v738, %v752
    %v755 = vlaneseq
    %v756 = vshrl.u32 %v755, 7
    %v757 = vsub.s32 1, %v756
    %v758 = vrot.slane %v32, %v757
    %v759 = vadd.f32 %v753, %v758
    %v760 = vadd.f32 %v754, %v758
    %v762 = vsel %vm269, %v39, 0
    %764 = vmatprep.subr.mxu0 0.0
    %765 = vmatpush1.msra.mxu0 %v759
    %766 = vmatprep.subr.mxu0 0.0
    %767 = vmatpush1.msra.mxu0 0.0
    %768 = vmatprep.subr.mxu0 0.0
    %769 = vmatpush1.msra.mxu0 0.0
    %770 = vmatprep.subr.mxu0 0.0
    %771 = vmatpush1.msra.mxu0 0.0
    %772 = vmatprep.subr.mxu0 0.0
    %773 = vmatpush1.msra.mxu0 0.0
    %774 = vmatprep.subr.mxu0 0.0
    %775 = vmatpush1.msra.mxu0 0.0
    %776 = vmatprep.subr.mxu0 0.0
    %777 = vmatpush1.msra.mxu0 0.0
    %778 = vmatprep.subr.mxu0 0.0
    %779 = vmatpush1.msra.mxu0 0.0
    %780 = vmatprep.subr.mxu0 0.0
    %781 = vmatpush1.msra.mxu0 0.0
    %782 = vmatprep.subr.mxu0 0.0
    %783 = vmatpush1.msra.mxu0 0.0
    %784 = vmatprep.subr.mxu0 0.0
    %785 = vmatpush1.msra.mxu0 0.0
    %786 = vmatprep.subr.mxu0 0.0
    %787 = vmatpush1.msra.mxu0 0.0
    %788 = vmatprep.subr.mxu0 0.0
    %789 = vmatpush1.msra.mxu0 0.0
    %790 = vmatprep.subr.mxu0 0.0
    %791 = vmatpush1.msra.mxu0 0.0
    %792 = vmatprep.subr.mxu0 0.0
    %793 = vmatpush1.msra.mxu0 0.0
    %794 = vmatprep.subr.mxu0 0.0
    %795 = vmatpush1.msra.mxu0 0.0
    %796 = vmatprep.subr.mxu0 0.0
    %797 = vmatpush1.msra.mxu0 0.0
    %798 = vmatprep.subr.mxu0 0.0
    %799 = vmatpush1.msra.mxu0 0.0
    %800 = vmatprep.subr.mxu0 0.0
    %801 = vmatpush1.msra.mxu0 0.0
    %802 = vmatprep.subr.mxu0 0.0
    %803 = vmatpush1.msra.mxu0 0.0
    %804 = vmatprep.subr.mxu0 0.0
    %805 = vmatpush1.msra.mxu0 0.0
    %806 = vmatprep.subr.mxu0 0.0
    %807 = vmatpush1.msra.mxu0 0.0
    %808 = vmatprep.subr.mxu0 0.0
    %809 = vmatpush1.msra.mxu0 0.0
    %810 = vmatprep.subr.mxu0 0.0
    %811 = vmatpush1.msra.mxu0 0.0
    %812 = vmatprep.subr.mxu0 0.0
    %813 = vmatpush1.msra.mxu0 0.0
    %814 = vmatprep.subr.mxu0 0.0
    %815 = vmatpush1.msra.mxu0 0.0
    %816 = vmatprep.subr.mxu0 0.0
    %817 = vmatpush1.msra.mxu0 0.0
    %818 = vmatprep.subr.mxu0 0.0
    %819 = vmatpush1.msra.mxu0 0.0
    %820 = vmatprep.subr.mxu0 0.0
    %821 = vmatpush1.msra.mxu0 0.0
    %822 = vmatprep.subr.mxu0 0.0
    %823 = vmatpush1.msra.mxu0 0.0
    %824 = vmatprep.subr.mxu0 0.0
    %825 = vmatpush1.msra.mxu0 0.0
    %826 = vmatprep.subr.mxu0 0.0
    %827 = vmatpush1.msra.mxu0 0.0
    %828 = vmatprep.mubr.f32.mxu0 0.0
    %829 = vmatmul.mubr.f32.gmra.mrb[0].mxu0 %v762
    %v830 = vpop.f32.mrb[0].mxu0
    %v831 = vadd.f32 0.0, %v830
    %v832 = vpop.f32.mrb[0].mxu0
    %833 = vdwg.mxu0
    %834 = vmatprep.subr.mxu0 0.0
    %835 = vmatpush1.msra.mxu0 %v760
    %836 = vmatprep.subr.mxu0 0.0
    %837 = vmatpush1.msra.mxu0 0.0
    %838 = vmatprep.subr.mxu0 0.0
    %839 = vmatpush1.msra.mxu0 0.0
    %840 = vmatprep.subr.mxu0 0.0
    %841 = vmatpush1.msra.mxu0 0.0
    %842 = vmatprep.subr.mxu0 0.0
    %843 = vmatpush1.msra.mxu0 0.0
    %844 = vmatprep.subr.mxu0 0.0
    %845 = vmatpush1.msra.mxu0 0.0
    %846 = vmatprep.subr.mxu0 0.0
    %847 = vmatpush1.msra.mxu0 0.0
    %848 = vmatprep.subr.mxu0 0.0
    %849 = vmatpush1.msra.mxu0 0.0
    %850 = vmatprep.subr.mxu0 0.0
    %851 = vmatpush1.msra.mxu0 0.0
    %852 = vmatprep.subr.mxu0 0.0
    %853 = vmatpush1.msra.mxu0 0.0
    %854 = vmatprep.subr.mxu0 0.0
    %855 = vmatpush1.msra.mxu0 0.0
    %856 = vmatprep.subr.mxu0 0.0
    %857 = vmatpush1.msra.mxu0 0.0
    %858 = vmatprep.subr.mxu0 0.0
    %859 = vmatpush1.msra.mxu0 0.0
    %860 = vmatprep.subr.mxu0 0.0
    %861 = vmatpush1.msra.mxu0 0.0
    %862 = vmatprep.subr.mxu0 0.0
    %863 = vmatpush1.msra.mxu0 0.0
    %864 = vmatprep.subr.mxu0 0.0
    %865 = vmatpush1.msra.mxu0 0.0
    %866 = vmatprep.subr.mxu0 0.0
    %867 = vmatpush1.msra.mxu0 0.0
    %868 = vmatprep.subr.mxu0 0.0
    %869 = vmatpush1.msra.mxu0 0.0
    %870 = vmatprep.subr.mxu0 0.0
    %871 = vmatpush1.msra.mxu0 0.0
    %872 = vmatprep.subr.mxu0 0.0
    %873 = vmatpush1.msra.mxu0 0.0
    %874 = vmatprep.subr.mxu0 0.0
    %875 = vmatpush1.msra.mxu0 0.0
    %876 = vmatprep.subr.mxu0 0.0
    %877 = vmatpush1.msra.mxu0 0.0
    %878 = vmatprep.subr.mxu0 0.0
    %879 = vmatpush1.msra.mxu0 0.0
    %880 = vmatprep.subr.mxu0 0.0
    %881 = vmatpush1.msra.mxu0 0.0
    %882 = vmatprep.subr.mxu0 0.0
    %883 = vmatpush1.msra.mxu0 0.0
    %884 = vmatprep.subr.mxu0 0.0
    %885 = vmatpush1.msra.mxu0 0.0
    %886 = vmatprep.subr.mxu0 0.0
    %887 = vmatpush1.msra.mxu0 0.0
    %888 = vmatprep.subr.mxu0 0.0
    %889 = vmatpush1.msra.mxu0 0.0
    %890 = vmatprep.subr.mxu0 0.0
    %891 = vmatpush1.msra.mxu0 0.0
    %892 = vmatprep.subr.mxu0 0.0
    %893 = vmatpush1.msra.mxu0 0.0
    %894 = vmatprep.subr.mxu0 0.0
    %895 = vmatpush1.msra.mxu0 0.0
    %896 = vmatprep.subr.mxu0 0.0
    %897 = vmatpush1.msra.mxu0 0.0
    %898 = vmatprep.mubr.f32.mxu0 0.0
    %899 = vmatmul.mubr.f32.gmra.mrb[0].mxu0 %v762
    %v900 = vpop.f32.mrb[0].mxu0
    %v901 = vadd.f32 0.0, %v900
    %v902 = vpop.f32.mrb[0].mxu0
    %903 = vdwg.mxu0
    %v904 = vadd.f32 %v553, %v831
    %v905 = vadd.f32 %v554, %v901
    %v906 = vsel %vm115, %v904, 0.0
    %907 = vadd.xlane.f32.xlu0 %v906
    %v908 = vpop.xlane.xlu0 %907
    %v909 = vsel %vm115, %v905, 0.0
    %910 = vadd.xlane.f32.xlu0 %v909
    %v911 = vpop.xlane.xlu0 %910
    %v912 = vmul.f32 %v908, %v522
    %v913 = vmul.f32 %v911, %v522
    %v914 = vsub.f32 %v904, %v912
    %v915 = vsub.f32 %v905, %v913
    %v916 = vmul.f32 %v914, %v914
    %v917 = vmul.f32 %v915, %v915
    %v918 = vsel %vm115, %v916, 0.0
    %919 = vadd.xlane.f32.xlu0 %v918
    %v920 = vpop.xlane.xlu0 %919
    %v921 = vsel %vm115, %v917, 0.0
    %922 = vadd.xlane.f32.xlu0 %v921
    %v923 = vpop.xlane.xlu0 %922
    %v924 = vmul.f32 %v920, %v522
    %v925 = vmul.f32 %v923, %v522
    %v926 = vadd.f32 %v924, 1e-05
    %v927 = vadd.f32 %v925, 1e-05
    %v928 = vrsqrt.pop %v926
    %v929 = vrsqrt.pop %v927
    %v930 = vmul.f32 %v914, %v928
    %v931 = vmul.f32 %v915, %v929
    %v932 = vlaneseq
    %v933 = vshrl.u32 %v932, 7
    %v934 = vsub.s32 4, %v933
    %v935 = vrot.slane %v32, %v934
    %v936 = vmul.f32 %v930, %v935
    %v937 = vmul.f32 %v931, %v935
    %v938 = vlaneseq
    %v939 = vshrl.u32 %v938, 7
    %v940 = vsub.s32 5, %v939
    %v941 = vrot.slane %v32, %v940
    %v942 = vadd.f32 %v936, %v941
    %v943 = vadd.f32 %v937, %v941
    %945 = vset.pattern.permute.xlu0 0
    %946 = vperm.xlu0 %945, %v942
    %v947 = vpop.permute.xlu0 %946
    %950 = vset.pattern.permute.xlu0 0
    %951 = vperm.xlu0 %950, %v943
    %v952 = vpop.permute.xlu0 %951
    %v954 = vlaneseq
    %v955 = vshrl.u32 %v954, 7
    %v956 = vsub.s32 0, %v955
    %v957 = vrot.slane %v29, %v956
    %v958 = vmul.f32 %v947, %v957
    %v959 = vmul.f32 %v952, %v957
    %960 = vset.pattern.permute.xlu0 1
    %961 = vperm.xlu0 %960, %v942
    %v962 = vpop.permute.xlu0 %961
    %964 = vset.pattern.permute.xlu0 1
    %965 = vperm.xlu0 %964, %v943
    %v966 = vpop.permute.xlu0 %965
    %v968 = vlaneseq
    %v969 = vshrl.u32 %v968, 7
    %v970 = vsub.s32 1, %v969
    %v971 = vrot.slane %v29, %v970
    %v972 = vmul.f32 %v962, %v971
    %v973 = vmul.f32 %v966, %v971
    %v974 = vadd.f32 %v958, %v972
    %v975 = vadd.f32 %v959, %v973
    %976 = vset.pattern.permute.xlu0 2
    %977 = vperm.xlu0 %976, %v942
    %v978 = vpop.permute.xlu0 %977
    %980 = vset.pattern.permute.xlu0 2
    %981 = vperm.xlu0 %980, %v943
    %v982 = vpop.permute.xlu0 %981
    %v984 = vlaneseq
    %v985 = vshrl.u32 %v984, 7
    %v986 = vsub.s32 2, %v985
    %v987 = vrot.slane %v29, %v986
    %v988 = vmul.f32 %v978, %v987
    %v989 = vmul.f32 %v982, %v987
    %v990 = vadd.f32 %v974, %v988
    %v991 = vadd.f32 %v975, %v989
    %992 = vset.pattern.permute.xlu0 3
    %993 = vperm.xlu0 %992, %v942
    %v994 = vpop.permute.xlu0 %993
    %996 = vset.pattern.permute.xlu0 3
    %997 = vperm.xlu0 %996, %v943
    %v998 = vpop.permute.xlu0 %997
    %v1000 = vlaneseq
    %v1001 = vshrl.u32 %v1000, 7
    %v1002 = vsub.s32 3, %v1001
    %v1003 = vrot.slane %v29, %v1002
    %v1004 = vmul.f32 %v994, %v1003
    %v1005 = vmul.f32 %v998, %v1003
    %v1006 = vadd.f32 %v990, %v1004
    %v1007 = vadd.f32 %v991, %v1005
    %v1008 = vlaneseq
    %v1009 = vshrl.u32 %v1008, 7
    %v1010 = vsub.s32 6, %v1009
    %v1011 = vrot.slane %v31, %v1010
    %v1012 = vadd.f32 %v1006, %v1011
    %v1013 = vadd.f32 %v1007, %v1011
    %1015 = vrot.lane.b32.xlu0 %v1012, 124
    %v1016 = vpop.permute.xlu0 %1015
    %v1017 = vsel %vm115, %v1012, 0
    %v1019 = vsel %vm115, %v1016, 0
    %1021 = vmatprep.subr.mxu0 0.0
    %1022 = vmatpush1.xpose.msra.mxu0 %v1019
    %1023 = vmatprep.subr.mxu0 0.0
    %1024 = vmatpush1.xpose.msra.mxu0 0.0
    %1025 = vmatprep.subr.mxu0 0.0
    %1026 = vmatpush1.xpose.msra.mxu0 0.0
    %1027 = vmatprep.subr.mxu0 0.0
    %1028 = vmatpush1.xpose.msra.mxu0 0.0
    %1029 = vmatprep.subr.mxu0 0.0
    %1030 = vmatpush1.xpose.msra.mxu0 0.0
    %1031 = vmatprep.subr.mxu0 0.0
    %1032 = vmatpush1.xpose.msra.mxu0 0.0
    %1033 = vmatprep.subr.mxu0 0.0
    %1034 = vmatpush1.xpose.msra.mxu0 0.0
    %1035 = vmatprep.subr.mxu0 0.0
    %1036 = vmatpush1.xpose.msra.mxu0 0.0
    %1037 = vmatprep.subr.mxu0 0.0
    %1038 = vmatpush1.xpose.msra.mxu0 0.0
    %1039 = vmatprep.subr.mxu0 0.0
    %1040 = vmatpush1.xpose.msra.mxu0 0.0
    %1041 = vmatprep.subr.mxu0 0.0
    %1042 = vmatpush1.xpose.msra.mxu0 0.0
    %1043 = vmatprep.subr.mxu0 0.0
    %1044 = vmatpush1.xpose.msra.mxu0 0.0
    %1045 = vmatprep.subr.mxu0 0.0
    %1046 = vmatpush1.xpose.msra.mxu0 0.0
    %1047 = vmatprep.subr.mxu0 0.0
    %1048 = vmatpush1.xpose.msra.mxu0 0.0
    %1049 = vmatprep.subr.mxu0 0.0
    %1050 = vmatpush1.xpose.msra.mxu0 0.0
    %1051 = vmatprep.subr.mxu0 0.0
    %1052 = vmatpush1.xpose.msra.mxu0 0.0
    %1053 = vmatprep.subr.mxu0 0.0
    %1054 = vmatpush1.xpose.msra.mxu0 0.0
    %1055 = vmatprep.subr.mxu0 0.0
    %1056 = vmatpush1.xpose.msra.mxu0 0.0
    %1057 = vmatprep.subr.mxu0 0.0
    %1058 = vmatpush1.xpose.msra.mxu0 0.0
    %1059 = vmatprep.subr.mxu0 0.0
    %1060 = vmatpush1.xpose.msra.mxu0 0.0
    %1061 = vmatprep.subr.mxu0 0.0
    %1062 = vmatpush1.xpose.msra.mxu0 0.0
    %1063 = vmatprep.subr.mxu0 0.0
    %1064 = vmatpush1.xpose.msra.mxu0 0.0
    %1065 = vmatprep.subr.mxu0 0.0
    %1066 = vmatpush1.xpose.msra.mxu0 0.0
    %1067 = vmatprep.subr.mxu0 0.0
    %1068 = vmatpush1.xpose.msra.mxu0 0.0
    %1069 = vmatprep.subr.mxu0 0.0
    %1070 = vmatpush1.xpose.msra.mxu0 0.0
    %1071 = vmatprep.subr.mxu0 0.0
    %1072 = vmatpush1.xpose.msra.mxu0 0.0
    %1073 = vmatprep.subr.mxu0 0.0
    %1074 = vmatpush1.xpose.msra.mxu0 0.0
    %1075 = vmatprep.subr.mxu0 0.0
    %1076 = vmatpush1.xpose.msra.mxu0 0.0
    %1077 = vmatprep.subr.mxu0 0.0
    %1078 = vmatpush1.xpose.msra.mxu0 0.0
    %1079 = vmatprep.subr.mxu0 0.0
    %1080 = vmatpush1.xpose.msra.mxu0 0.0
    %1081 = vmatprep.subr.mxu0 0.0
    %1082 = vmatpush1.xpose.msra.mxu0 0.0
    %1083 = vmatprep.subr.mxu0 0.0
    %1084 = vmatpush1.xpose.msra.mxu0 0.0
    %1085 = vmatprep.mubr.f32.mxu0 0.0
    %1086 = vmatmul.mubr.f32.gmra.mrb[0].mxu0 %v1017
    %v1087 = vpop.f32.mrb[0].mxu0
    %v1088 = vadd.f32 0.0, %v1087
    %v1089 = vpop.f32.mrb[0].mxu0
    %1090 = vdwg.mxu0
    %1092 = vrot.lane.b32.xlu0 %v1013, 124
    %v1093 = vpop.permute.xlu0 %1092
    %v1094 = vsel %vm115, %v1013, 0
    %v1096 = vsel %vm115, %v1093, 0
    %1098 = vmatprep.subr.mxu0 0.0
    %1099 = vmatpush1.xpose.msra.mxu0 %v1096
    %1100 = vmatprep.subr.mxu0 0.0
    %1101 = vmatpush1.xpose.msra.mxu0 0.0
    %1102 = vmatprep.subr.mxu0 0.0
    %1103 = vmatpush1.xpose.msra.mxu0 0.0
    %1104 = vmatprep.subr.mxu0 0.0
    %1105 = vmatpush1.xpose.msra.mxu0 0.0
    %1106 = vmatprep.subr.mxu0 0.0
    %1107 = vmatpush1.xpose.msra.mxu0 0.0
    %1108 = vmatprep.subr.mxu0 0.0
    %1109 = vmatpush1.xpose.msra.mxu0 0.0
    %1110 = vmatprep.subr.mxu0 0.0
    %1111 = vmatpush1.xpose.msra.mxu0 0.0
    %1112 = vmatprep.subr.mxu0 0.0
    %1113 = vmatpush1.xpose.msra.mxu0 0.0
    %1114 = vmatprep.subr.mxu0 0.0
    %1115 = vmatpush1.xpose.msra.mxu0 0.0
    %1116 = vmatprep.subr.mxu0 0.0
    %1117 = vmatpush1.xpose.msra.mxu0 0.0
    %1118 = vmatprep.subr.mxu0 0.0
    %1119 = vmatpush1.xpose.msra.mxu0 0.0
    %1120 = vmatprep.subr.mxu0 0.0
    %1121 = vmatpush1.xpose.msra.mxu0 0.0
    %1122 = vmatprep.subr.mxu0 0.0
    %1123 = vmatpush1.xpose.msra.mxu0 0.0
    %1124 = vmatprep.subr.mxu0 0.0
    %1125 = vmatpush1.xpose.msra.mxu0 0.0
    %1126 = vmatprep.subr.mxu0 0.0
    %1127 = vmatpush1.xpose.msra.mxu0 0.0
    %1128 = vmatprep.subr.mxu0 0.0
    %1129 = vmatpush1.xpose.msra.mxu0 0.0
    %1130 = vmatprep.subr.mxu0 0.0
    %1131 = vmatpush1.xpose.msra.mxu0 0.0
    %1132 = vmatprep.subr.mxu0 0.0
    %1133 = vmatpush1.xpose.msra.mxu0 0.0
    %1134 = vmatprep.subr.mxu0 0.0
    %1135 = vmatpush1.xpose.msra.mxu0 0.0
    %1136 = vmatprep.subr.mxu0 0.0
    %1137 = vmatpush1.xpose.msra.mxu0 0.0
    %1138 = vmatprep.subr.mxu0 0.0
    %1139 = vmatpush1.xpose.msra.mxu0 0.0
    %1140 = vmatprep.subr.mxu0 0.0
    %1141 = vmatpush1.xpose.msra.mxu0 0.0
    %1142 = vmatprep.subr.mxu0 0.0
    %1143 = vmatpush1.xpose.msra.mxu0 0.0
    %1144 = vmatprep.subr.mxu0 0.0
    %1145 = vmatpush1.xpose.msra.mxu0 0.0
    %1146 = vmatprep.subr.mxu0 0.0
    %1147 = vmatpush1.xpose.msra.mxu0 0.0
    %1148 = vmatprep.subr.mxu0 0.0
    %1149 = vmatpush1.xpose.msra.mxu0 0.0
    %1150 = vmatprep.subr.mxu0 0.0
    %1151 = vmatpush1.xpose.msra.mxu0 0.0
    %1152 = vmatprep.subr.mxu0 0.0
    %1153 = vmatpush1.xpose.msra.mxu0 0.0
    %1154 = vmatprep.subr.mxu0 0.0
    %1155 = vmatpush1.xpose.msra.mxu0 0.0
    %1156 = vmatprep.subr.mxu0 0.0
    %1157 = vmatpush1.xpose.msra.mxu0 0.0
    %1158 = vmatprep.subr.mxu0 0.0
    %1159 = vmatpush1.xpose.msra.mxu0 0.0
    %1160 = vmatprep.subr.mxu0 0.0
    %1161 = vmatpush1.xpose.msra.mxu0 0.0
    %1162 = vmatprep.mubr.f32.mxu0 0.0
    %1163 = vmatmul.mubr.f32.gmra.mrb[0].mxu0 %v1094
    %v1164 = vpop.f32.mrb[0].mxu0
    %v1165 = vadd.f32 0.0, %v1164
    %v1166 = vpop.f32.mrb[0].mxu0
    %1167 = vdwg.mxu0
    %v1168 = vmul.f32 %v1088, 0.5
    %v1169 = vmul.f32 %v1165, 0.5
    %v1170 = vsel %vm269, %v1168, -inf
    %1171 = vmax.xlane.f32.xlu0 %v1170
    %v1172 = vpop.xlane.xlu0 %1171
    %v1173 = vsel %vm269, %v1169, -inf
    %1174 = vmax.xlane.f32.xlu0 %v1173
    %v1175 = vpop.xlane.xlu0 %1174
    %v1176 = vsub.f32 %v1168, %v1172
    %v1177 = vsub.f32 %v1169, %v1175
    %v1178 = vmul.f32 %v1176, 1.442695
    %v1179 = vpow.pop %v1178
    %v1180 = vmul.f32 %v1177, 1.442695
    %v1181 = vpow.pop %v1180
    %v1182 = vsel %vm269, %v1179, 0.0
    %1183 = vadd.xlane.f32.xlu0 %v1182
    %v1184 = vpop.xlane.xlu0 %1183
    %v1185 = vsel %vm269, %v1181, 0.0
    %1186 = vadd.xlane.f32.xlu0 %v1185
    %v1187 = vpop.xlane.xlu0 %1186
    %v1188 = vrcp.pop %v1184
    %v1189 = vrcp.pop %v1187
    %v1190 = vmul.f32 %v1179, %v1188
    %v1191 = vmul.f32 %v1181, %v1189
    %1192 = vrot.lane.b32.xlu0 %v1012, 120
    %v1193 = vpop.permute.xlu0 %1192
    %v1196 = vsel %vm269, %v1190, 0
    %1198 = vmatprep.subr.mxu0 0.0
    %1199 = vmatpush1.msra.mxu0 %v1193
    %1200 = vmatprep.subr.mxu0 0.0
    %1201 = vmatpush1.msra.mxu0 0.0
    %1202 = vmatprep.subr.mxu0 0.0
    %1203 = vmatpush1.msra.mxu0 0.0
    %1204 = vmatprep.subr.mxu0 0.0
    %1205 = vmatpush1.msra.mxu0 0.0
    %1206 = vmatprep.subr.mxu0 0.0
    %1207 = vmatpush1.msra.mxu0 0.0
    %1208 = vmatprep.subr.mxu0 0.0
    %1209 = vmatpush1.msra.mxu0 0.0
    %1210 = vmatprep.subr.mxu0 0.0
    %1211 = vmatpush1.msra.mxu0 0.0
    %1212 = vmatprep.subr.mxu0 0.0
    %1213 = vmatpush1.msra.mxu0 0.0
    %1214 = vmatprep.subr.mxu0 0.0
    %1215 = vmatpush1.msra.mxu0 0.0
    %1216 = vmatprep.subr.mxu0 0.0
    %1217 = vmatpush1.msra.mxu0 0.0
    %1218 = vmatprep.subr.mxu0 0.0
    %1219 = vmatpush1.msra.mxu0 0.0
    %1220 = vmatprep.subr.mxu0 0.0
    %1221 = vmatpush1.msra.mxu0 0.0
    %1222 = vmatprep.subr.mxu0 0.0
    %1223 = vmatpush1.msra.mxu0 0.0
    %1224 = vmatprep.subr.mxu0 0.0
    %1225 = vmatpush1.msra.mxu0 0.0
    %1226 = vmatprep.subr.mxu0 0.0
    %1227 = vmatpush1.msra.mxu0 0.0
    %1228 = vmatprep.subr.mxu0 0.0
    %1229 = vmatpush1.msra.mxu0 0.0
    %1230 = vmatprep.subr.mxu0 0.0
    %1231 = vmatpush1.msra.mxu0 0.0
    %1232 = vmatprep.subr.mxu0 0.0
    %1233 = vmatpush1.msra.mxu0 0.0
    %1234 = vmatprep.subr.mxu0 0.0
    %1235 = vmatpush1.msra.mxu0 0.0
    %1236 = vmatprep.subr.mxu0 0.0
    %1237 = vmatpush1.msra.mxu0 0.0
    %1238 = vmatprep.subr.mxu0 0.0
    %1239 = vmatpush1.msra.mxu0 0.0
    %1240 = vmatprep.subr.mxu0 0.0
    %1241 = vmatpush1.msra.mxu0 0.0
    %1242 = vmatprep.subr.mxu0 0.0
    %1243 = vmatpush1.msra.mxu0 0.0
    %1244 = vmatprep.subr.mxu0 0.0
    %1245 = vmatpush1.msra.mxu0 0.0
    %1246 = vmatprep.subr.mxu0 0.0
    %1247 = vmatpush1.msra.mxu0 0.0
    %1248 = vmatprep.subr.mxu0 0.0
    %1249 = vmatpush1.msra.mxu0 0.0
    %1250 = vmatprep.subr.mxu0 0.0
    %1251 = vmatpush1.msra.mxu0 0.0
    %1252 = vmatprep.subr.mxu0 0.0
    %1253 = vmatpush1.msra.mxu0 0.0
    %1254 = vmatprep.subr.mxu0 0.0
    %1255 = vmatpush1.msra.mxu0 0.0
    %1256 = vmatprep.subr.mxu0 0.0
    %1257 = vmatpush1.msra.mxu0 0.0
    %1258 = vmatprep.subr.mxu0 0.0
    %1259 = vmatpush1.msra.mxu0 0.0
    %1260 = vmatprep.subr.mxu0 0.0
    %1261 = vmatpush1.msra.mxu0 0.0
    %1262 = vmatprep.mubr.f32.mxu0 0.0
    %1263 = vmatmul.mubr.f32.gmra.mrb[0].mxu0 %v1196
    %v1264 = vpop.f32.mrb[0].mxu0
    %v1265 = vadd.f32 0.0, %v1264
    %v1266 = vpop.f32.mrb[0].mxu0
    %1267 = vdwg.mxu0
    %1268 = vrot.lane.b32.xlu0 %v1013, 120
    %v1269 = vpop.permute.xlu0 %1268
    %v1272 = vsel %vm269, %v1191, 0
    %1274 = vmatprep.subr.mxu0 0.0
    %1275 = vmatpush1.msra.mxu0 %v1269
    %1276 = vmatprep.subr.mxu0 0.0
    %1277 = vmatpush1.msra.mxu0 0.0
    %1278 = vmatprep.subr.mxu0 0.0
    %1279 = vmatpush1.msra.mxu0 0.0
    %1280 = vmatprep.subr.mxu0 0.0
    %1281 = vmatpush1.msra.mxu0 0.0
    %1282 = vmatprep.subr.mxu0 0.0
    %1283 = vmatpush1.msra.mxu0 0.0
    %1284 = vmatprep.subr.mxu0 0.0
    %1285 = vmatpush1.msra.mxu0 0.0
    %1286 = vmatprep.subr.mxu0 0.0
    %1287 = vmatpush1.msra.mxu0 0.0
    %1288 = vmatprep.subr.mxu0 0.0
    %1289 = vmatpush1.msra.mxu0 0.0
    %1290 = vmatprep.subr.mxu0 0.0
    %1291 = vmatpush1.msra.mxu0 0.0
    %1292 = vmatprep.subr.mxu0 0.0
    %1293 = vmatpush1.msra.mxu0 0.0
    %1294 = vmatprep.subr.mxu0 0.0
    %1295 = vmatpush1.msra.mxu0 0.0
    %1296 = vmatprep.subr.mxu0 0.0
    %1297 = vmatpush1.msra.mxu0 0.0
    %1298 = vmatprep.subr.mxu0 0.0
    %1299 = vmatpush1.msra.mxu0 0.0
    %1300 = vmatprep.subr.mxu0 0.0
    %1301 = vmatpush1.msra.mxu0 0.0
    %1302 = vmatprep.subr.mxu0 0.0
    %1303 = vmatpush1.msra.mxu0 0.0
    %1304 = vmatprep.subr.mxu0 0.0
    %1305 = vmatpush1.msra.mxu0 0.0
    %1306 = vmatprep.subr.mxu0 0.0
    %1307 = vmatpush1.msra.mxu0 0.0
    %1308 = vmatprep.subr.mxu0 0.0
    %1309 = vmatpush1.msra.mxu0 0.0
    %1310 = vmatprep.subr.mxu0 0.0
    %1311 = vmatpush1.msra.mxu0 0.0
    %1312 = vmatprep.subr.mxu0 0.0
    %1313 = vmatpush1.msra.mxu0 0.0
    %1314 = vmatprep.subr.mxu0 0.0
    %1315 = vmatpush1.msra.mxu0 0.0
    %1316 = vmatprep.subr.mxu0 0.0
    %1317 = vmatpush1.msra.mxu0 0.0
    %1318 = vmatprep.subr.mxu0 0.0
    %1319 = vmatpush1.msra.mxu0 0.0
    %1320 = vmatprep.subr.mxu0 0.0
    %1321 = vmatpush1.msra.mxu0 0.0
    %1322 = vmatprep.subr.mxu0 0.0
    %1323 = vmatpush1.msra.mxu0 0.0
    %1324 = vmatprep.subr.mxu0 0.0
    %1325 = vmatpush1.msra.mxu0 0.0
    %1326 = vmatprep.subr.mxu0 0.0
    %1327 = vmatpush1.msra.mxu0 0.0
    %1328 = vmatprep.subr.mxu0 0.0
    %1329 = vmatpush1.msra.mxu0 0.0
    %1330 = vmatprep.subr.mxu0 0.0
    %1331 = vmatpush1.msra.mxu0 0.0
    %1332 = vmatprep.subr.mxu0 0.0
    %1333 = vmatpush1.msra.mxu0 0.0
    %1334 = vmatprep.subr.mxu0 0.0
    %1335 = vmatpush1.msra.mxu0 0.0
    %1336 = vmatprep.subr.mxu0 0.0
    %1337 = vmatpush1.msra.mxu0 0.0
    %1338 = vmatprep.mubr.f32.mxu0 0.0
    %1339 = vmatmul.mubr.f32.gmra.mrb[0].mxu0 %v1272
    %v1340 = vpop.f32.mrb[0].mxu0
    %v1341 = vadd.f32 0.0, %v1340
    %v1342 = vpop.f32.mrb[0].mxu0
    %1343 = vdwg.mxu0
    %1345 = vset.pattern.permute.xlu0 0
    %1346 = vperm.xlu0 %1345, %v1265
    %v1347 = vpop.permute.xlu0 %1346
    %1350 = vset.pattern.permute.xlu0 0
    %1351 = vperm.xlu0 %1350, %v1341
    %v1352 = vpop.permute.xlu0 %1351
    %v1354 = vlaneseq
    %v1355 = vshrl.u32 %v1354, 7
    %v1356 = vsub.s32 4, %v1355
    %v1357 = vrot.slane %v29, %v1356
    %v1358 = vmul.f32 %v1347, %v1357
    %v1359 = vmul.f32 %v1352, %v1357
    %1360 = vset.pattern.permute.xlu0 1
    %1361 = vperm.xlu0 %1360, %v1265
    %v1362 = vpop.permute.xlu0 %1361
    %1364 = vset.pattern.permute.xlu0 1
    %1365 = vperm.xlu0 %1364, %v1341
    %v1366 = vpop.permute.xlu0 %1365
    %v1368 = vlaneseq
    %v1369 = vshrl.u32 %v1368, 7
    %v1370 = vsub.s32 5, %v1369
    %v1371 = vrot.slane %v29, %v1370
    %v1372 = vmul.f32 %v1362, %v1371
    %v1373 = vmul.f32 %v1366, %v1371
    %v1374 = vadd.f32 %v1358, %v1372
    %v1375 = vadd.f32 %v1359, %v1373
    %1376 = vset.pattern.permute.xlu0 2
    %1377 = vperm.xlu0 %1376, %v1265
    %v1378 = vpop.permute.xlu0 %1377
    %1380 = vset.pattern.permute.xlu0 2
    %1381 = vperm.xlu0 %1380, %v1341
    %v1382 = vpop.permute.xlu0 %1381
    %v1384 = vlaneseq
    %v1385 = vshrl.u32 %v1384, 7
    %v1386 = vsub.s32 6, %v1385
    %v1387 = vrot.slane %v29, %v1386
    %v1388 = vmul.f32 %v1378, %v1387
    %v1389 = vmul.f32 %v1382, %v1387
    %v1390 = vadd.f32 %v1374, %v1388
    %v1391 = vadd.f32 %v1375, %v1389
    %1392 = vset.pattern.permute.xlu0 3
    %1393 = vperm.xlu0 %1392, %v1265
    %v1394 = vpop.permute.xlu0 %1393
    %1396 = vset.pattern.permute.xlu0 3
    %1397 = vperm.xlu0 %1396, %v1341
    %v1398 = vpop.permute.xlu0 %1397
    %v1400 = vlaneseq
    %v1401 = vshrl.u32 %v1400, 7
    %v1402 = vsub.s32 7, %v1401
    %v1403 = vrot.slane %v29, %v1402
    %v1404 = vmul.f32 %v1394, %v1403
    %v1405 = vmul.f32 %v1398, %v1403
    %v1406 = vadd.f32 %v1390, %v1404
    %v1407 = vadd.f32 %v1391, %v1405
    %v1408 = vlaneseq
    %v1409 = vshrl.u32 %v1408, 7
    %v1410 = vsub.s32 7, %v1409
    %v1411 = vrot.slane %v31, %v1410
    %v1412 = vadd.f32 %v1406, %v1411
    %v1413 = vadd.f32 %v1407, %v1411
    %v1414 = vadd.f32 %v942, %v1412
    %v1415 = vadd.f32 %v943, %v1413
    %v1416 = vsel %vm115, %v1414, 0.0
    %1417 = vadd.xlane.f32.xlu0 %v1416
    %v1418 = vpop.xlane.xlu0 %1417
    %v1419 = vsel %vm115, %v1415, 0.0
    %1420 = vadd.xlane.f32.xlu0 %v1419
    %v1421 = vpop.xlane.xlu0 %1420
    %v1422 = vmul.f32 %v1418, %v522
    %v1423 = vmul.f32 %v1421, %v522
    %v1424 = vsub.f32 %v1414, %v1422
    %v1425 = vsub.f32 %v1415, %v1423
    %v1426 = vmul.f32 %v1424, %v1424
    %v1427 = vmul.f32 %v1425, %v1425
    %v1428 = vsel %vm115, %v1426, 0.0
    %1429 = vadd.xlane.f32.xlu0 %v1428
    %v1430 = vpop.xlane.xlu0 %1429
    %v1431 = vsel %vm115, %v1427, 0.0
    %1432 = vadd.xlane.f32.xlu0 %v1431
    %v1433 = vpop.xlane.xlu0 %1432
    %v1434 = vmul.f32 %v1430, %v522
    %v1435 = vmul.f32 %v1433, %v522
    %v1436 = vadd.f32 %v1434, 1e-05
    %v1437 = vadd.f32 %v1435, 1e-05
    %v1438 = vrsqrt.pop %v1436
    %v1439 = vrsqrt.pop %v1437
    %v1440 = vmul.f32 %v1424, %v1438
    %v1441 = vmul.f32 %v1425, %v1439
    %v1442 = vmul.f32 %v1440, %v935
    %v1443 = vmul.f32 %v1441, %v935
    %v1444 = vadd.f32 %v1442, %v941
    %v1445 = vadd.f32 %v1443, %v941
    %1447 = vset.pattern.permute.xlu0 0
    %1448 = vperm.xlu0 %1447, %v1444
    %v1449 = vpop.permute.xlu0 %1448
    %1452 = vset.pattern.permute.xlu0 0
    %1453 = vperm.xlu0 %1452, %v1445
    %v1454 = vpop.permute.xlu0 %1453
    %v1456 = vmul.f32 %v1449, %v568
    %v1457 = vmul.f32 %v1454, %v568
    %1458 = vset.pattern.permute.xlu0 1
    %1459 = vperm.xlu0 %1458, %v1444
    %v1460 = vpop.permute.xlu0 %1459
    %1462 = vset.pattern.permute.xlu0 1
    %1463 = vperm.xlu0 %1462, %v1445
    %v1464 = vpop.permute.xlu0 %1463
    %v1466 = vmul.f32 %v1460, %v582
    %v1467 = vmul.f32 %v1464, %v582
    %v1468 = vadd.f32 %v1456, %v1466
    %v1469 = vadd.f32 %v1457, %v1467
    %1470 = vset.pattern.permute.xlu0 2
    %1471 = vperm.xlu0 %1470, %v1444
    %v1472 = vpop.permute.xlu0 %1471
    %1474 = vset.pattern.permute.xlu0 2
    %1475 = vperm.xlu0 %1474, %v1445
    %v1476 = vpop.permute.xlu0 %1475
    %v1478 = vmul.f32 %v1472, %v598
    %v1479 = vmul.f32 %v1476, %v598
    %v1480 = vadd.f32 %v1468, %v1478
    %v1481 = vadd.f32 %v1469, %v1479
    %1482 = vset.pattern.permute.xlu0 3
    %1483 = vperm.xlu0 %1482, %v1444
    %v1484 = vpop.permute.xlu0 %1483
    %1486 = vset.pattern.permute.xlu0 3
    %1487 = vperm.xlu0 %1486, %v1445
    %v1488 = vpop.permute.xlu0 %1487
    %v1490 = vmul.f32 %v1484, %v614
    %v1491 = vmul.f32 %v1488, %v614
    %v1492 = vadd.f32 %v1480, %v1490
    %v1493 = vadd.f32 %v1481, %v1491
    %v1494 = vadd.f32 %v1492, %v622
    %v1495 = vadd.f32 %v1493, %v622
    %v1496 = vmax.f32 %v1494, 0.0
    %v1497 = vmax.f32 %v1495, 0.0
    %1499 = vset.pattern.permute.xlu0 0
    %1500 = vperm.xlu0 %1499, %v1496
    %v1501 = vpop.permute.xlu0 %1500
    %1504 = vset.pattern.permute.xlu0 0
    %1505 = vperm.xlu0 %1504, %v1497
    %v1506 = vpop.permute.xlu0 %1505
    %v1508 = vmul.f32 %v1501, %v640
    %v1509 = vmul.f32 %v1506, %v640
    %1510 = vset.pattern.permute.xlu0 1
    %1511 = vperm.xlu0 %1510, %v1496
    %v1512 = vpop.permute.xlu0 %1511
    %1514 = vset.pattern.permute.xlu0 1
    %1515 = vperm.xlu0 %1514, %v1497
    %v1516 = vpop.permute.xlu0 %1515
    %v1518 = vmul.f32 %v1512, %v654
    %v1519 = vmul.f32 %v1516, %v654
    %v1520 = vadd.f32 %v1508, %v1518
    %v1521 = vadd.f32 %v1509, %v1519
    %1522 = vset.pattern.permute.xlu0 2
    %1523 = vperm.xlu0 %1522, %v1496
    %v1524 = vpop.permute.xlu0 %1523
    %1526 = vset.pattern.permute.xlu0 2
    %1527 = vperm.xlu0 %1526, %v1497
    %v1528 = vpop.permute.xlu0 %1527
    %v1530 = vmul.f32 %v1524, %v670
    %v1531 = vmul.f32 %v1528, %v670
    %v1532 = vadd.f32 %v1520, %v1530
    %v1533 = vadd.f32 %v1521, %v1531
    %1534 = vset.pattern.permute.xlu0 3
    %1535 = vperm.xlu0 %1534, %v1496
    %v1536 = vpop.permute.xlu0 %1535
    %1538 = vset.pattern.permute.xlu0 3
    %1539 = vperm.xlu0 %1538, %v1497
    %v1540 = vpop.permute.xlu0 %1539
    %v1542 = vmul.f32 %v1536, %v686
    %v1543 = vmul.f32 %v1540, %v686
    %v1544 = vadd.f32 %v1532, %v1542
    %v1545 = vadd.f32 %v1533, %v1543
    %1546 = vset.pattern.permute.xlu0 4
    %1547 = vperm.xlu0 %1546, %v1496
    %v1548 = vpop.permute.xlu0 %1547
    %1550 = vset.pattern.permute.xlu0 4
    %1551 = vperm.xlu0 %1550, %v1497
    %v1552 = vpop.permute.xlu0 %1551
    %v1554 = vmul.f32 %v1548, %v702
    %v1555 = vmul.f32 %v1552, %v702
    %v1556 = vadd.f32 %v1544, %v1554
    %v1557 = vadd.f32 %v1545, %v1555
    %1558 = vset.pattern.permute.xlu0 5
    %1559 = vperm.xlu0 %1558, %v1496
    %v1560 = vpop.permute.xlu0 %1559
    %1562 = vset.pattern.permute.xlu0 5
    %1563 = vperm.xlu0 %1562, %v1497
    %v1564 = vpop.permute.xlu0 %1563
    %v1566 = vmul.f32 %v1560, %v718
    %v1567 = vmul.f32 %v1564, %v718
    %v1568 = vadd.f32 %v1556, %v1566
    %v1569 = vadd.f32 %v1557, %v1567
    %1570 = vset.pattern.permute.xlu0 6
    %1571 = vperm.xlu0 %1570, %v1496
    %v1572 = vpop.permute.xlu0 %1571
    %1574 = vset.pattern.permute.xlu0 6
    %1575 = vperm.xlu0 %1574, %v1497
    %v1576 = vpop.permute.xlu0 %1575
    %v1578 = vmul.f32 %v1572, %v734
    %v1579 = vmul.f32 %v1576, %v734
    %v1580 = vadd.f32 %v1568, %v1578
    %v1581 = vadd.f32 %v1569, %v1579
    %1582 = vset.pattern.permute.xlu0 7
    %1583 = vperm.xlu0 %1582, %v1496
    %v1584 = vpop.permute.xlu0 %1583
    %1586 = vset.pattern.permute.xlu0 7
    %1587 = vperm.xlu0 %1586, %v1497
    %v1588 = vpop.permute.xlu0 %1587
    %v1590 = vmul.f32 %v1584, %v750
    %v1591 = vmul.f32 %v1588, %v750
    %v1592 = vadd.f32 %v1580, %v1590
    %v1593 = vadd.f32 %v1581, %v1591
    %v1594 = vadd.f32 %v1592, %v758
    %v1595 = vadd.f32 %v1593, %v758
    %v1596 = vadd.f32 %v1444, %v1594
    %v1597 = vadd.f32 %v1445, %v1595
    %v1598 = vsel %vm115, %v1596, 0.0
    %1599 = vadd.xlane.f32.xlu0 %v1598
    %v1600 = vpop.xlane.xlu0 %1599
    %v1601 = vsel %vm115, %v1597, 0.0
    %1602 = vadd.xlane.f32.xlu0 %v1601
    %v1603 = vpop.xlane.xlu0 %1602
    %v1604 = vmul.f32 %v1600, %v522
    %v1605 = vmul.f32 %v1603, %v522
    %v1606 = vsub.f32 %v1596, %v1604
    %v1607 = vsub.f32 %v1597, %v1605
    %v1608 = vmul.f32 %v1606, %v1606
    %v1609 = vmul.f32 %v1607, %v1607
    %v1610 = vsel %vm115, %v1608, 0.0
    %1611 = vadd.xlane.f32.xlu0 %v1610
    %v1612 = vpop.xlane.xlu0 %1611
    %v1613 = vsel %vm115, %v1609, 0.0
    %1614 = vadd.xlane.f32.xlu0 %v1613
    %v1615 = vpop.xlane.xlu0 %1614
    %v1616 = vmul.f32 %v1612, %v522
    %v1617 = vmul.f32 %v1615, %v522
    %v1618 = vadd.f32 %v1616, 1e-05
    %v1619 = vadd.f32 %v1617, 1e-05
    %v1620 = vrsqrt.pop %v1618
    %v1621 = vrsqrt.pop %v1619
    %v1622 = vmul.f32 %v1606, %v1620
    %v1623 = vmul.f32 %v1607, %v1621
    %v1624 = vmul.f32 %v1622, %v935
    %v1625 = vmul.f32 %v1623, %v935
    %v1626 = vadd.f32 %v1624, %v941
    %v1627 = vadd.f32 %v1625, %v941
    %1628 = vst.msk [vmem:[%s2] sm:$0xff] %vm115, %v1626
    %1629 = vst.msk [vmem:[%s2 + $0x8] sm:$0xff] %vm115, %v1627
    // Predicated region
    $region14: #{tpu_custom_call.1} parent=1 // pred_check
      _
    $region15: #{tpu_custom_call.1} parent=1 // pred_check_branch
      %1631 = sbr.rel (0) target = $region17
    $region16: #{tpu_custom_call.1} parent=1 // pred_region
      _
    $region17: #{tpu_custom_call.1} parent=1 // pred_fallthru
      _
    // Predicated region
    $region18: #{tpu_custom_call.1} parent=1 // pred_check
      _
    $region19: #{tpu_custom_call.1} parent=1 // pred_check_branch
      %1633 = sbr.rel (0) target = $region21
    $region20: #{tpu_custom_call.1} parent=1 // pred_region
      _
    $region21: #{tpu_custom_call.1} parent=1 // pred_fallthru
      _
    %1634 = vsyncpa [#allocation3], 1

</llo_original>
